<compile_context>
chip_gen: v7x
topology: tpu7x:2x2x1
jax: 0.10.0
libtpu: 0.0.40
codegen_flags: <defaults>
</compile_context>

<pallas_src>
import functools

import jax
import jax.numpy as jnp
from jax.experimental import pallas as pl
from jax.experimental.pallas import tpu as pltpu


_HIDDEN = (128, 256, 384, 512)  # fixed hidden sizes of MLP_G


# --------------------------------------------------------------------------
# Kernel
# --------------------------------------------------------------------------
def _mlp_g_kernel(x_ref,
                  w1_ref, b1_ref,
                  w2_ref, b2_ref,
                  w3_ref, b3_ref,
                  w4_ref, b4_ref,
                  w5_ref, b5_ref,
                  o_ref):
    """Fused 5-layer MLP; ReLU between layers, none after the last.

    Grid axis 0 (size out_blocks) splits the LAST layer's output columns;
    layers 1-4 are recomputed per grid point (trivial at M<=16, and the grid
    has a single point on single-TC chips).
    """
    def dense(h_bf16, w_ref, b_ref):
        # bf16 operands on the MXU, f32 accumulate, f32 bias add.
        return (jnp.dot(h_bf16, w_ref[...], preferred_element_type=jnp.float32)
                + b_ref[...])

    h = x_ref[...]                                        # bf16 (Bp, nz)
    for w_ref, b_ref in ((w1_ref, b1_ref), (w2_ref, b2_ref),
                         (w3_ref, b3_ref), (w4_ref, b4_ref)):
        h = jnp.maximum(dense(h, w_ref, b_ref), 0.0).astype(jnp.bfloat16)

    # Last layer: no ReLU (matches nn.Sequential in MLP_G); f32 output.
    o_ref[...] = dense(h, w5_ref, b5_ref)


# --------------------------------------------------------------------------
# Parameter helpers
# --------------------------------------------------------------------------
def init_mlp_g_params(key, isize, nz, nc):
    """nn.Linear-style init: U(-1/sqrt(fan_in), +1/sqrt(fan_in)); W as (in, out)."""
    dims = [nz, *_HIDDEN, nc * isize * isize]
    params = []
    for i in range(5):
        fan_in, fan_out = dims[i], dims[i + 1]
        key, kw, kb = jax.random.split(key, 3)
        bound = 1.0 / (fan_in ** 0.5)
        w = jax.random.uniform(kw, (fan_in, fan_out), jnp.float32, -bound, bound)
        b = jax.random.uniform(kb, (1, fan_out), jnp.float32, -bound, bound)
        params.append((w, b))
    return params


def choose_out_blocks(out_dim):
    """2-way N-split of the last layer only on v7x (2 TensorCores per chip).

    On single-TC v5e/v6e the grid would be a sequential loop: ~0.35 us extra
    per step, layers 1-4 recomputed, no overlap benefit -> use 1.
    """
    try:
        kind = jax.devices()[0].device_kind.lower()
    except Exception:
        return 1
    if "v7" in kind and out_dim % (2 * 128) == 0:
        return 2
    return 1


def pack_mlp_g_params(params, out_blocks):
    """One-time prep: weights -> bf16, biases stay f32, W5 pre-split along N."""
    (w1, b1), (w2, b2), (w3, b3), (w4, b4), (w5, b5) = params
    k5, out_dim = w5.shape
    assert out_dim % out_blocks == 0
    half = out_dim // out_blocks
    w5p = (w5.astype(jnp.bfloat16)
             .reshape(k5, out_blocks, half)
             .transpose(1, 0, 2))                   # (out_blocks, K5, half)
    wcast = lambda a: a.astype(jnp.bfloat16)
    bcast = lambda a: a.astype(jnp.float32)         # biases: keep full precision
    return [wcast(w1), bcast(b1), wcast(w2), bcast(b2), wcast(w3), bcast(b3),
            wcast(w4), bcast(b4), w5p, bcast(b5)]


# --------------------------------------------------------------------------
# Forward
# --------------------------------------------------------------------------
@functools.partial(jax.jit, static_argnames=("nc", "isize", "out_blocks"))
def mlp_g_forward(x, packed, *, nc, isize, out_blocks):
    """Equivalent of MLP_G.forward.

    x: (B, nz) or (B, nz, 1, 1) float32 noise.
    packed: output of pack_mlp_g_params (bf16 weights, f32 biases, W5 split).
    returns: (B, nc, isize, isize) float32.
    """
    B = x.shape[0]
    x2 = x.reshape(B, -1).astype(jnp.bfloat16)        # input.view(B, nz)
    nz = x2.shape[1]
    out_dim = nc * isize * isize
    half = out_dim // out_blocks

    # Pad batch to a multiple of 16 (bf16 sublane packing).
    Bp = max(16, ((B + 15) // 16) * 16)
    xp = jnp.pad(x2, ((0, Bp - B), (0, 0)))

    w1, b1, w2, b2, w3, b3, w4, b4, w5p, b5 = packed
    k5 = w5p.shape[1]

    def full(a):  # whole-array block, same block index every grid step
        return pl.BlockSpec(a.shape, lambda j: (0,) * a.ndim)

    in_specs = [
        pl.BlockSpec((Bp, nz), lambda j: (0, 0)),
        full(w1), full(b1), full(w2), full(b2),
        full(w3), full(b3), full(w4), full(b4),
        # W5 column-slice as a normal pipelined input; leading dim squeezed so
        # the kernel sees a (K5, half) ref.  Its DMA is issued in the pipeline
        # prologue alongside x/W1-W4 (no exposed wait).
        pl.BlockSpec((None, k5, half), lambda j: (j, 0, 0)),
        pl.BlockSpec((1, half), lambda j: (0, j)),     # b5 column slice (f32)
    ]
    out_specs = pl.BlockSpec((Bp, half), lambda j: (0, j))

    ins = [xp, w1, b1, w2, b2, w3, b3, w4, b4, w5p, b5]

    # Advisory cost for XLA scheduling around this short, DMA-bound kernel.
    flops = (2 * Bp * out_blocks
             * sum(a * b for a, b in zip((nz,) + _HIDDEN[:-1], _HIDDEN))
             + 2 * Bp * k5 * out_dim)
    bytes_accessed = (sum(int(a.size) * a.dtype.itemsize for a in ins)
                      + Bp * out_dim * 4)

    # Honest VMEM footprint: double-buffered per-step input blocks + output.
    blk_in_bytes = (
        Bp * nz * 2
        + sum(int(a.size) * a.dtype.itemsize
              for a in (w1, b1, w2, b2, w3, b3, w4, b4))
        + k5 * half * 2          # W5 slice (bf16)
        + half * 4)              # b5 slice (f32)
    blk_out_bytes = Bp * half * 4
    vmem_need = 2 * (blk_in_bytes + blk_out_bytes)
    vmem_limit = int(min(64 * 2**20, max(16 * 2**20, 2 * vmem_need)))

    out = pl.pallas_call(
        _mlp_g_kernel,
        out_shape=jax.ShapeDtypeStruct((Bp, out_dim), jnp.float32),
        grid_spec=pltpu.PrefetchScalarGridSpec(
            num_scalar_prefetch=0,
            grid=(out_blocks,),
            in_specs=in_specs,
            out_specs=out_specs,
        ),
        compiler_params=pltpu.CompilerParams(
            dimension_semantics=("parallel",),
            vmem_limit_bytes=vmem_limit),
        cost_estimate=pl.CostEstimate(flops=int(flops), transcendentals=0,
                                      bytes_accessed=int(bytes_accessed)),
    )(*ins)

    # output.view(B, nc, isize, isize) (NCHW, matching PyTorch)
    return out[:B].reshape(B, nc, isize, isize)


# --------------------------------------------------------------------------
# Pure-JAX reference (mirrors kernel numerics: bf16 weights & activation
# casts, f32 biases, f32 accumulate)
# --------------------------------------------------------------------------
def _reference_forward(x, params, nc, isize):
    B = x.shape[0]
    h = x.reshape(B, -1).astype(jnp.bfloat16)
    n = len(params)
    y = None
    for i, (w, b) in enumerate(params):
        y = (jnp.dot(h, w.astype(jnp.bfloat16),
                     preferred_element_type=jnp.float32)
             + b.astype(jnp.float32))
        if i < n - 1:
            h = jnp.maximum(y, 0.0).astype(jnp.bfloat16)
    return y.reshape(B, nc, isize, isize)


if __name__ == "__main__":
    # Small shapes consistent with the module: batch=2, nz=8, nc=4, isize=16.
    # TODO(synk): ngpu>1 data_parallel branch is a device-dispatch detail with
    # no kernel-level equivalent; single-device forward is implemented.
    B, nz, nc, isize, ngf, ngpu = 2, 8, 4, 16, 32, 1   # ngf/ngpu unused by MLP_G

    key = jax.random.PRNGKey(0)
    key_p, key_x = jax.random.split(key)
    params = init_mlp_g_params(key_p, isize, nz, nc)

    out_dim = nc * isize * isize
    out_blocks = choose_out_blocks(out_dim)            # 2 on v7x, else 1
    packed = pack_mlp_g_params(params, out_blocks)     # one-time bf16 prep

    # Noise in the usual GAN NCHW form (B, nz, 1, 1).
    x = jax.random.normal(key_x, (B, nz, 1, 1), jnp.float32)

    y = mlp_g_forward(x, packed, nc=nc, isize=isize, out_blocks=out_blocks)
    y = jax.block_until_ready(y)
    assert y.shape == (B, nc, isize, isize), y.shape

    y_ref = _reference_forward(x, params, nc, isize)
    max_err = float(jnp.max(jnp.abs(y - y_ref)))
    assert jnp.allclose(y, y_ref, atol=5e-3, rtol=5e-2), (
        "mismatch vs reference, max abs err = " + str(max_err))

    print("KERNEL_OK")
</pallas_src>

<mosaic_0001>
module attributes {stable_mosaic.version = 11 : i64} {
  func.func @_mlp_g_kernel(%arg0: i32, %arg1: memref<16x8xbf16, #tpu.memory_space<vmem>>, %arg2: memref<8x128xbf16, #tpu.memory_space<vmem>>, %arg3: memref<1x128xf32, #tpu.memory_space<vmem>>, %arg4: memref<128x256xbf16, #tpu.memory_space<vmem>>, %arg5: memref<1x256xf32, #tpu.memory_space<vmem>>, %arg6: memref<256x384xbf16, #tpu.memory_space<vmem>>, %arg7: memref<1x384xf32, #tpu.memory_space<vmem>>, %arg8: memref<384x512xbf16, #tpu.memory_space<vmem>>, %arg9: memref<1x512xf32, #tpu.memory_space<vmem>>, %arg10: memref<1x512x1024xbf16, #tpu.memory_space<vmem>>, %arg11: memref<1x1024xf32, #tpu.memory_space<vmem>>, %arg12: memref<16x1024xf32, #tpu.memory_space<vmem>>) attributes {dimension_semantics = [#tpu.dimension_semantics<parallel>], iteration_bounds = array<i64: 1>, scalar_prefetch = 0 : i64, scratch_operands = 0 : i64, tpu.core_type = #tpu.core_type<tc>, window_params = [{pipeline_mode = #tpu.pipeline_mode<synchronous>, transform_indices = @transform_0, window_bounds = array<i64: 16, 8>}, {pipeline_mode = #tpu.pipeline_mode<synchronous>, transform_indices = @transform_1, window_bounds = array<i64: 8, 128>}, {pipeline_mode = #tpu.pipeline_mode<synchronous>, transform_indices = @transform_2, window_bounds = array<i64: 1, 128>}, {pipeline_mode = #tpu.pipeline_mode<synchronous>, transform_indices = @transform_3, window_bounds = array<i64: 128, 256>}, {pipeline_mode = #tpu.pipeline_mode<synchronous>, transform_indices = @transform_4, window_bounds = array<i64: 1, 256>}, {pipeline_mode = #tpu.pipeline_mode<synchronous>, transform_indices = @transform_5, window_bounds = array<i64: 256, 384>}, {pipeline_mode = #tpu.pipeline_mode<synchronous>, transform_indices = @transform_6, window_bounds = array<i64: 1, 384>}, {pipeline_mode = #tpu.pipeline_mode<synchronous>, transform_indices = @transform_7, window_bounds = array<i64: 384, 512>}, {pipeline_mode = #tpu.pipeline_mode<synchronous>, transform_indices = @transform_8, window_bounds = array<i64: 1, 512>}, {transform_indices = @transform_9, window_bounds = array<i64: 1, 512, 1024>}, {transform_indices = @transform_10, window_bounds = array<i64: 1, 1024>}, {transform_indices = @transform_11, window_bounds = array<i64: 16, 1024>}]} {
    %c0 = arith.constant 0 : index
    %c0_0 = arith.constant 0 : index
    %0 = vector.load %arg1[%c0, %c0_0] : memref<16x8xbf16, #tpu.memory_space<vmem>>, vector<16x8xbf16>
    %c0_1 = arith.constant 0 : index
    %c0_2 = arith.constant 0 : index
    %1 = vector.load %arg2[%c0_1, %c0_2] : memref<8x128xbf16, #tpu.memory_space<vmem>>, vector<8x128xbf16>
    %cst = arith.constant dense<0.000000e+00> : vector<16x128xf32>
    %2 = tpu.matmul %0, %1, %cst {dimension_numbers = #tpu.dot_dimension_numbers<[1], [0], [0], [1], [0, 0, 1, 1], [], []>} : vector<16x8xbf16>, vector<8x128xbf16>, vector<16x128xf32> -> vector<16x128xf32>
    %c0_3 = arith.constant 0 : index
    %c0_4 = arith.constant 0 : index
    %3 = vector.load %arg3[%c0_3, %c0_4] : memref<1x128xf32, #tpu.memory_space<vmem>>, vector<1x128xf32>
    %4 = vector.broadcast %3 : vector<1x128xf32> to vector<16x128xf32>
    %5 = arith.addf %2, %4 : vector<16x128xf32>
    %cst_5 = arith.constant 0.000000e+00 : f32
    %6 = vector.broadcast %cst_5 : f32 to vector<16x128xf32>
    %7 = arith.maximumf %5, %6 : vector<16x128xf32>
    %8 = arith.truncf %7 : vector<16x128xf32> to vector<16x128xbf16>
    %c0_6 = arith.constant 0 : index
    %c0_7 = arith.constant 0 : index
    %9 = vector.load %arg4[%c0_6, %c0_7] : memref<128x256xbf16, #tpu.memory_space<vmem>>, vector<128x256xbf16>
    %cst_8 = arith.constant dense<0.000000e+00> : vector<16x256xf32>
    %10 = tpu.matmul %8, %9, %cst_8 {dimension_numbers = #tpu.dot_dimension_numbers<[1], [0], [0], [1], [0, 0, 1, 1], [], []>} : vector<16x128xbf16>, vector<128x256xbf16>, vector<16x256xf32> -> vector<16x256xf32>
    %c0_9 = arith.constant 0 : index
    %c0_10 = arith.constant 0 : index
    %11 = vector.load %arg5[%c0_9, %c0_10] : memref<1x256xf32, #tpu.memory_space<vmem>>, vector<1x256xf32>
    %12 = vector.broadcast %11 : vector<1x256xf32> to vector<16x256xf32>
    %13 = arith.addf %10, %12 : vector<16x256xf32>
    %cst_11 = arith.constant 0.000000e+00 : f32
    %14 = vector.broadcast %cst_11 : f32 to vector<16x256xf32>
    %15 = arith.maximumf %13, %14 : vector<16x256xf32>
    %16 = arith.truncf %15 : vector<16x256xf32> to vector<16x256xbf16>
    %c0_12 = arith.constant 0 : index
    %c0_13 = arith.constant 0 : index
    %17 = vector.load %arg6[%c0_12, %c0_13] : memref<256x384xbf16, #tpu.memory_space<vmem>>, vector<256x384xbf16>
    %cst_14 = arith.constant dense<0.000000e+00> : vector<16x384xf32>
    %18 = tpu.matmul %16, %17, %cst_14 {dimension_numbers = #tpu.dot_dimension_numbers<[1], [0], [0], [1], [0, 0, 1, 1], [], []>} : vector<16x256xbf16>, vector<256x384xbf16>, vector<16x384xf32> -> vector<16x384xf32>
    %c0_15 = arith.constant 0 : index
    %c0_16 = arith.constant 0 : index
    %19 = vector.load %arg7[%c0_15, %c0_16] : memref<1x384xf32, #tpu.memory_space<vmem>>, vector<1x384xf32>
    %20 = vector.broadcast %19 : vector<1x384xf32> to vector<16x384xf32>
    %21 = arith.addf %18, %20 : vector<16x384xf32>
    %cst_17 = arith.constant 0.000000e+00 : f32
    %22 = vector.broadcast %cst_17 : f32 to vector<16x384xf32>
    %23 = arith.maximumf %21, %22 : vector<16x384xf32>
    %24 = arith.truncf %23 : vector<16x384xf32> to vector<16x384xbf16>
    %c0_18 = arith.constant 0 : index
    %c0_19 = arith.constant 0 : index
    %25 = vector.load %arg8[%c0_18, %c0_19] : memref<384x512xbf16, #tpu.memory_space<vmem>>, vector<384x512xbf16>
    %cst_20 = arith.constant dense<0.000000e+00> : vector<16x512xf32>
    %26 = tpu.matmul %24, %25, %cst_20 {dimension_numbers = #tpu.dot_dimension_numbers<[1], [0], [0], [1], [0, 0, 1, 1], [], []>} : vector<16x384xbf16>, vector<384x512xbf16>, vector<16x512xf32> -> vector<16x512xf32>
    %c0_21 = arith.constant 0 : index
    %c0_22 = arith.constant 0 : index
    %27 = vector.load %arg9[%c0_21, %c0_22] : memref<1x512xf32, #tpu.memory_space<vmem>>, vector<1x512xf32>
    %28 = vector.broadcast %27 : vector<1x512xf32> to vector<16x512xf32>
    %29 = arith.addf %26, %28 : vector<16x512xf32>
    %cst_23 = arith.constant 0.000000e+00 : f32
    %30 = vector.broadcast %cst_23 : f32 to vector<16x512xf32>
    %31 = arith.maximumf %29, %30 : vector<16x512xf32>
    %32 = arith.truncf %31 : vector<16x512xf32> to vector<16x512xbf16>
    %c0_24 = arith.constant 0 : index
    %c0_25 = arith.constant 0 : index
    %c0_26 = arith.constant 0 : index
    %33 = vector.load %arg10[%c0_24, %c0_25, %c0_26] : memref<1x512x1024xbf16, #tpu.memory_space<vmem>>, vector<1x512x1024xbf16>
    %34 = vector.shape_cast %33 : vector<1x512x1024xbf16> to vector<512x1024xbf16>
    %cst_27 = arith.constant dense<0.000000e+00> : vector<16x1024xf32>
    %35 = tpu.matmul %32, %34, %cst_27 {dimension_numbers = #tpu.dot_dimension_numbers<[1], [0], [0], [1], [0, 0, 1, 1], [], []>} : vector<16x512xbf16>, vector<512x1024xbf16>, vector<16x1024xf32> -> vector<16x1024xf32>
    %c0_28 = arith.constant 0 : index
    %c0_29 = arith.constant 0 : index
    %36 = vector.load %arg11[%c0_28, %c0_29] : memref<1x1024xf32, #tpu.memory_space<vmem>>, vector<1x1024xf32>
    %37 = vector.broadcast %36 : vector<1x1024xf32> to vector<16x1024xf32>
    %38 = arith.addf %35, %37 : vector<16x1024xf32>
    %c0_30 = arith.constant 0 : index
    %c0_31 = arith.constant 0 : index
    %39 = vector.load %arg12[%c0_30, %c0_31] : memref<16x1024xf32, #tpu.memory_space<vmem>>, vector<16x1024xf32>
    tpu.vector_store %arg12[%c0_30, %c0_31], %38 {strides = array<i32>} : memref<16x1024xf32, #tpu.memory_space<vmem>>, vector<16x1024xf32>,
    return
  }
  func.func @transform_0(%arg0: i32) -> (i32, i32) {
    %c0_i32 = arith.constant 0 : i32
    %c0_i32_0 = arith.constant 0 : i32
    %c0_i32_1 = arith.constant 0 : i32
    return %c0_i32, %c0_i32_0 : i32, i32
  }
  func.func @transform_1(%arg0: i32) -> (i32, i32) {
    %c0_i32 = arith.constant 0 : i32
    %c0_i32_0 = arith.constant 0 : i32
    %c0_i32_1 = arith.constant 0 : i32
    return %c0_i32, %c0_i32_0 : i32, i32
  }
  func.func @transform_2(%arg0: i32) -> (i32, i32) {
    %c0_i32 = arith.constant 0 : i32
    %c0_i32_0 = arith.constant 0 : i32
    %c0_i32_1 = arith.constant 0 : i32
    return %c0_i32, %c0_i32_0 : i32, i32
  }
  func.func @transform_3(%arg0: i32) -> (i32, i32) {
    %c0_i32 = arith.constant 0 : i32
    %c0_i32_0 = arith.constant 0 : i32
    %c0_i32_1 = arith.constant 0 : i32
    return %c0_i32, %c0_i32_0 : i32, i32
  }
  func.func @transform_4(%arg0: i32) -> (i32, i32) {
    %c0_i32 = arith.constant 0 : i32
    %c0_i32_0 = arith.constant 0 : i32
    %c0_i32_1 = arith.constant 0 : i32
    return %c0_i32, %c0_i32_0 : i32, i32
  }
  func.func @transform_5(%arg0: i32) -> (i32, i32) {
    %c0_i32 = arith.constant 0 : i32
    %c0_i32_0 = arith.constant 0 : i32
    %c0_i32_1 = arith.constant 0 : i32
    return %c0_i32, %c0_i32_0 : i32, i32
  }
  func.func @transform_6(%arg0: i32) -> (i32, i32) {
    %c0_i32 = arith.constant 0 : i32
    %c0_i32_0 = arith.constant 0 : i32
    %c0_i32_1 = arith.constant 0 : i32
    return %c0_i32, %c0_i32_0 : i32, i32
  }
  func.func @transform_7(%arg0: i32) -> (i32, i32) {
    %c0_i32 = arith.constant 0 : i32
    %c0_i32_0 = arith.constant 0 : i32
    %c0_i32_1 = arith.constant 0 : i32
    return %c0_i32, %c0_i32_0 : i32, i32
  }
  func.func @transform_8(%arg0: i32) -> (i32, i32) {
    %c0_i32 = arith.constant 0 : i32
    %c0_i32_0 = arith.constant 0 : i32
    %c0_i32_1 = arith.constant 0 : i32
    return %c0_i32, %c0_i32_0 : i32, i32
  }
  func.func @transform_9(%arg0: i32) -> (i32, i32, i32) {
    %c0_i32 = arith.constant 0 : i32
    %c0_i32_0 = arith.constant 0 : i32
    %c0_i32_1 = arith.constant 0 : i32
    return %arg0, %c0_i32, %c0_i32_0 : i32, i32, i32
  }
  func.func @transform_10(%arg0: i32) -> (i32, i32) {
    %c0_i32 = arith.constant 0 : i32
    %c0_i32_0 = arith.constant 0 : i32
    return %c0_i32, %arg0 : i32, i32
  }
  func.func @transform_11(%arg0: i32) -> (i32, i32) {
    %c0_i32 = arith.constant 0 : i32
    %c0_i32_0 = arith.constant 0 : i32
    return %c0_i32, %arg0 : i32, i32
  }
}

</mosaic_0001>

<llo_original>
// kernel: mlp_g_forward.1
$region0: #{mlp_g_forward.1}
  #allocation0 [shape = 'u32[]', space=smem, size = 0x4, offset = 0x4, fixed_abs, tag = 'smem constant byte address 0x4 - core index']
  #allocation1 [shape = 'u32[144,128]{1,0:T(1,128)}', space=vmem, size = 0x12000, scoped, tag = 'internal scratch']
  %s0 = inlined_call_operand.vmem [shape: bf16[16,8], index: 0, kind: input, shape index: {}]
  %s1 = inlined_call_operand.vmem [shape: bf16[8,128], index: 1, kind: input, shape index: {}]
  %s2 = inlined_call_operand.vmem [shape: f32[1,128], index: 2, kind: input, shape index: {}]
  %s3 = inlined_call_operand.hbm [shape: bf16[128,256], index: 3, kind: input, shape index: {}]
  %s4 = inlined_call_operand.vmem [shape: f32[1,256], index: 4, kind: input, shape index: {}]
  %s5 = inlined_call_operand.hbm [shape: bf16[256,384], index: 5, kind: input, shape index: {}]
  %s6 = inlined_call_operand.vmem [shape: f32[1,384], index: 6, kind: input, shape index: {}]
  %s7 = inlined_call_operand.hbm [shape: bf16[384,512], index: 7, kind: input, shape index: {}]
  %s8 = inlined_call_operand.vmem [shape: f32[1,512], index: 8, kind: input, shape index: {}]
  %s9 = inlined_call_operand.hbm [shape: bf16[1,512,1024], index: 9, kind: input, shape index: {}]
  %s10 = inlined_call_operand.vmem [shape: f32[1,1024], index: 10, kind: input, shape index: {}]
  %s11 = inlined_call_operand.vmem [shape: f32[16,1024], index: 11, kind: output, shape index: {}]
  %s12 = sld [smem:[#allocation0]]
  $region70: #{mlp_g_forward.1} parent=0
    _
  %s14 = ssub.s32 1, %s12
  %s15 = scalar_select 0, %s14, %s12
  $region1: #{mlp_g_forward.1} parent=0
    #allocation2 [shape = 'u8[65536]{0}', space=vmem, size = 0x10000, scoped, tag = 'input window, operand 3, single buffered']
    #allocation3 [shape = 's32[1]{0}', space=sflag, size = 0x4, scoped, tag = 'scoped memory for mlp_g_forward.1']
    #allocation4 [shape = 'u8[196608]{0}', space=vmem, size = 0x30000, scoped, tag = 'input window, operand 5, single buffered']
    #allocation5 [shape = 's32[1]{0}', space=sflag, size = 0x4, scoped, tag = 'scoped memory for mlp_g_forward.1']
    #allocation6 [shape = 'u8[393216]{0}', space=vmem, size = 0x60000, scoped, tag = 'input window, operand 7, single buffered']
    #allocation7 [shape = 'u8[1048576]{0}', space=vmem, size = 0x100000, scoped, tag = 'input window, operand 9, single buffered']
    #allocation8 [shape = 's32[1]{0}', space=sflag, size = 0x4, scoped, tag = 'scoped memory for mlp_g_forward.1']
    %16 = vsyncpa [#allocation3], 0
    %17 = vsyncpa [#allocation5], 0
    %18 = vsyncpa [#allocation8], 0
    // Predicated region
    $region2: #{mlp_g_forward.1} parent=1 // pred_check
      _
    $region3: #{mlp_g_forward.1} parent=1 // pred_check_branch
      %20 = sbr.rel (0) target = $region5
    $region4: #{mlp_g_forward.1} parent=1 // pred_region
      _
    $region5: #{mlp_g_forward.1} parent=1 // pred_fallthru
      _
    // Predicated region
    $region6: #{mlp_g_forward.1} parent=1 // pred_check
      _
    $region7: #{mlp_g_forward.1} parent=1 // pred_check_branch
      %22 = sbr.rel (0) target = $region9
    $region8: #{mlp_g_forward.1} parent=1 // pred_region
      _
    $region9: #{mlp_g_forward.1} parent=1 // pred_fallthru
      _
    // Predicated region
    $region10: #{mlp_g_forward.1} parent=1 // pred_check
      _
    $region11: #{mlp_g_forward.1} parent=1 // pred_check_branch
      %24 = sbr.rel (0) target = $region13
    $region12: #{mlp_g_forward.1} parent=1 // pred_region
      _
    $region13: #{mlp_g_forward.1} parent=1 // pred_fallthru
      _
    // Predicated region
    $region14: #{mlp_g_forward.1} parent=1 // pred_check
      _
    $region15: #{mlp_g_forward.1} parent=1 // pred_check_branch
      %26 = sbr.rel (0) target = $region17
    $region16: #{mlp_g_forward.1} parent=1 // pred_region
      %s28 = ssub.s32 2048, 2048
      %29 = vsyncadd [#allocation3], %s28
      %s30 = sshll.u32 [#allocation2], 4
      %s31 = int_to_ptr.vmem [resolvable:$true] %s30
      %36 = dma.hbm_to_vmem [thread:$0]  %s3, 2048, %s31, [#allocation3], 128, 128, 8
    $region17: #{mlp_g_forward.1} parent=1 // pred_fallthru
      _
    // Predicated region
    $region18: #{mlp_g_forward.1} parent=1 // pred_check
      _
    $region19: #{mlp_g_forward.1} parent=1 // pred_check_branch
      %38 = sbr.rel (0) target = $region21
    $region20: #{mlp_g_forward.1} parent=1 // pred_region
      _
    $region21: #{mlp_g_forward.1} parent=1 // pred_fallthru
      _
    // Predicated region
    $region22: #{mlp_g_forward.1} parent=1 // pred_check
      _
    $region23: #{mlp_g_forward.1} parent=1 // pred_check_branch
      %40 = sbr.rel (0) target = $region25
    $region24: #{mlp_g_forward.1} parent=1 // pred_region
      %s42 = ssub.s32 6144, 6144
      %43 = vsyncadd [#allocation5], %s42
      %s44 = sshll.u32 [#allocation4], 4
      %s45 = int_to_ptr.vmem [resolvable:$true] %s44
      %50 = dma.hbm_to_vmem [thread:$0]  %s5, 6144, %s45, [#allocation5], 192, 192, 12
    $region25: #{mlp_g_forward.1} parent=1 // pred_fallthru
      _
    // Predicated region
    $region26: #{mlp_g_forward.1} parent=1 // pred_check
      _
    $region27: #{mlp_g_forward.1} parent=1 // pred_check_branch
      %52 = sbr.rel (0) target = $region29
    $region28: #{mlp_g_forward.1} parent=1 // pred_region
      _
    $region29: #{mlp_g_forward.1} parent=1 // pred_fallthru
      _
    // Predicated region
    $region30: #{mlp_g_forward.1} parent=1 // pred_check
      _
    $region31: #{mlp_g_forward.1} parent=1 // pred_check_branch
      %54 = sbr.rel (0) target = $region33
    $region32: #{mlp_g_forward.1} parent=1 // pred_region
      %s56 = ssub.s32 12288, 12288
      %57 = vsyncadd [#allocation5], %s56
      %s58 = sshll.u32 [#allocation6], 4
      %s59 = int_to_ptr.vmem [resolvable:$true] %s58
      %64 = dma.hbm_to_vmem [thread:$0]  %s7, 12288, %s59, [#allocation5], 256, 256, 16
    $region33: #{mlp_g_forward.1} parent=1 // pred_fallthru
      _
    // Predicated region
    $region34: #{mlp_g_forward.1} parent=1 // pred_check
      _
    $region35: #{mlp_g_forward.1} parent=1 // pred_check_branch
      %66 = sbr.rel (0) target = $region37
    $region36: #{mlp_g_forward.1} parent=1 // pred_region
      _
    $region37: #{mlp_g_forward.1} parent=1 // pred_fallthru
      _
    // Predicated region
    $region38: #{mlp_g_forward.1} parent=1 // pred_check
      _
    $region39: #{mlp_g_forward.1} parent=1 // pred_check_branch
      %68 = sbr.rel (0) target = $region41
    $region40: #{mlp_g_forward.1} parent=1 // pred_region
      %s70 = ssub.s32 32768, 32768
      %71 = vsyncadd [#allocation8], %s70
      %s72 = sshll.u32 [#allocation7], 4
      %s73 = int_to_ptr.vmem [resolvable:$true] %s72
      %78 = dma.hbm_to_vmem [thread:$0]  %s9, 32768, %s73, [#allocation8], 512, 512, 32
    $region41: #{mlp_g_forward.1} parent=1 // pred_fallthru
      _
    // Predicated region
    $region42: #{mlp_g_forward.1} parent=1 // pred_check
      _
    $region43: #{mlp_g_forward.1} parent=1 // pred_check_branch
      %80 = sbr.rel (0) target = $region45
    $region44: #{mlp_g_forward.1} parent=1 // pred_region
      _
    $region45: #{mlp_g_forward.1} parent=1 // pred_fallthru
      _
    // Predicated region
    $region46: #{mlp_g_forward.1} parent=1 // pred_check
      _
    $region47: #{mlp_g_forward.1} parent=1 // pred_check_branch
      %82 = sbr.rel (0) target = $region49
    $region48: #{mlp_g_forward.1} parent=1 // pred_region
      %83 = dma.done [#allocation3], 2048
    $region49: #{mlp_g_forward.1} parent=1 // pred_fallthru
      _
    // Predicated region
    $region50: #{mlp_g_forward.1} parent=1 // pred_check
      _
    $region51: #{mlp_g_forward.1} parent=1 // pred_check_branch
      %85 = sbr.rel (0) target = $region53
    $region52: #{mlp_g_forward.1} parent=1 // pred_region
      %86 = dma.done [#allocation5], 6144
    $region53: #{mlp_g_forward.1} parent=1 // pred_fallthru
      _
    // Predicated region
    $region54: #{mlp_g_forward.1} parent=1 // pred_check
      _
    $region55: #{mlp_g_forward.1} parent=1 // pred_check_branch
      %88 = sbr.rel (0) target = $region57
    $region56: #{mlp_g_forward.1} parent=1 // pred_region
      %89 = dma.done [#allocation5], 12288
    $region57: #{mlp_g_forward.1} parent=1 // pred_fallthru
      _
    // Predicated region
    $region58: #{mlp_g_forward.1} parent=1 // pred_check
      _
    $region59: #{mlp_g_forward.1} parent=1 // pred_check_branch
      %91 = sbr.rel (0) target = $region61
    $region60: #{mlp_g_forward.1} parent=1 // pred_region
      %92 = dma.done [#allocation8], 32768
    $region61: #{mlp_g_forward.1} parent=1 // pred_fallthru
      _
    %v94 = vld [vmem:[%s0] sm:$0xf]
    %v95 = vld [vmem:[%s0 + $0x4] sm:$0xf]
    %v96 = vld [vmem:[%s1] sm:$0xf]
    %v97 = vld [vmem:[%s2] sm:$0x1]
    %v99 = vlaneseq
    %v100 = vshrl.u32 %v99, 7
    %v101 = vsub.s32 0, %v100
    %v102 = vrot.slane %v97, %v101
    %v106 = vunpack.c.l.b16 %v94
    %v107 = vunpack.c.l.b16 %v95
    %v108 = vpack.c.b16 %v107, %v106
    %vm109 = vcmask 64512
    %v111 = vsel %vm109, %v108, 0
    %vm113 = vcmask 1043456
    %v115 = vsel %vm113, %v96, 0
    %117 = vmatprep.subr.bf16.mxu0 0
    %118 = vmatpush1.bf16.msra.mxu0 %v115
    %119 = vmatprep.subr.bf16.mxu0 0
    %120 = vmatpush1.bf16.msra.mxu0 0
    %121 = vmatprep.subr.bf16.mxu0 0
    %122 = vmatpush1.bf16.msra.mxu0 0
    %123 = vmatprep.subr.bf16.mxu0 0
    %124 = vmatpush1.bf16.msra.mxu0 0
    %125 = vmatprep.subr.bf16.mxu0 0
    %126 = vmatpush1.bf16.msra.mxu0 0
    %127 = vmatprep.subr.bf16.mxu0 0
    %128 = vmatpush1.bf16.msra.mxu0 0
    %129 = vmatprep.subr.bf16.mxu0 0
    %130 = vmatpush1.bf16.msra.mxu0 0
    %131 = vmatprep.subr.bf16.mxu0 0
    %132 = vmatpush1.bf16.msra.mxu0 0
    %133 = vmatprep.subr.bf16.mxu0 0
    %134 = vmatpush1.bf16.msra.mxu0 0
    %135 = vmatprep.subr.bf16.mxu0 0
    %136 = vmatpush1.bf16.msra.mxu0 0
    %137 = vmatprep.subr.bf16.mxu0 0
    %138 = vmatpush1.bf16.msra.mxu0 0
    %139 = vmatprep.subr.bf16.mxu0 0
    %140 = vmatpush1.bf16.msra.mxu0 0
    %141 = vmatprep.subr.bf16.mxu0 0
    %142 = vmatpush1.bf16.msra.mxu0 0
    %143 = vmatprep.subr.bf16.mxu0 0
    %144 = vmatpush1.bf16.msra.mxu0 0
    %145 = vmatprep.subr.bf16.mxu0 0
    %146 = vmatpush1.bf16.msra.mxu0 0
    %147 = vmatprep.subr.bf16.mxu0 0
    %148 = vmatpush1.bf16.msra.mxu0 0
    %149 = vmatprep.mubr.bf16.mxu0 0
    %150 = vmatmul.mubr.bf16.gmra.mrb[0].mxu0 %v111
    %v151 = vpop.f32.mrb[0].mxu0
    %v152 = vadd.f32 %v102, %v151
    %v153 = vpop.f32.mrb[0].mxu0
    %v154 = vpop.f32.mrb[0].mxu0
    %v155 = vadd.f32 %v102, %v154
    %v156 = vpop.f32.mrb[0].mxu0
    %157 = vdwg.mxu0
    %v158 = vmax.f32 %v152, 0.0
    %v159 = vmax.f32 %v155, 0.0
    %v160 = vpack.c.bf16 %v159, %v158
    %v161 = vld [vmem:[#allocation2] sm:$0xff]
    %v162 = vld [vmem:[#allocation2 + $0x8] sm:$0xff]
    %v163 = vld [vmem:[#allocation2 + $0x10] sm:$0xff]
    %v164 = vld [vmem:[#allocation2 + $0x18] sm:$0xff]
    %v165 = vld [vmem:[#allocation2 + $0x20] sm:$0xff]
    %v166 = vld [vmem:[#allocation2 + $0x28] sm:$0xff]
    %v167 = vld [vmem:[#allocation2 + $0x30] sm:$0xff]
    %v168 = vld [vmem:[#allocation2 + $0x38] sm:$0xff]
    %v169 = vld [vmem:[#allocation2 + $0x40] sm:$0xff]
    %v170 = vld [vmem:[#allocation2 + $0x48] sm:$0xff]
    %v171 = vld [vmem:[#allocation2 + $0x50] sm:$0xff]
    %v172 = vld [vmem:[#allocation2 + $0x58] sm:$0xff]
    %v173 = vld [vmem:[#allocation2 + $0x60] sm:$0xff]
    %v174 = vld [vmem:[#allocation2 + $0x68] sm:$0xff]
    %v175 = vld [vmem:[#allocation2 + $0x70] sm:$0xff]
    %v176 = vld [vmem:[#allocation2 + $0x78] sm:$0xff]
    %v177 = vld [vmem:[%s4] sm:$0x3]
    %v179 = vlaneseq
    %v180 = vshrl.u32 %v179, 7
    %v181 = vsub.s32 0, %v180
    %v182 = vrot.slane %v177, %v181
    %v183 = vlaneseq
    %v184 = vshrl.u32 %v183, 7
    %v185 = vsub.s32 1, %v184
    %v186 = vrot.slane %v177, %v185
    %v205 = vunpack.c.l.b16 %v161
    %v206 = vunpack.c.h.b16 %v161
    %v207 = vunpack.c.l.b16 %v162
    %v208 = vunpack.c.h.b16 %v162
    %v209 = vunpack.c.l.b16 %v163
    %v210 = vunpack.c.h.b16 %v163
    %v211 = vunpack.c.l.b16 %v164
    %v212 = vunpack.c.h.b16 %v164
    %v213 = vunpack.c.l.b16 %v165
    %v214 = vunpack.c.h.b16 %v165
    %v215 = vunpack.c.l.b16 %v166
    %v216 = vunpack.c.h.b16 %v166
    %v217 = vunpack.c.l.b16 %v167
    %v218 = vunpack.c.h.b16 %v167
    %v219 = vunpack.c.l.b16 %v168
    %v220 = vunpack.c.h.b16 %v168
    %v221 = vunpack.c.l.b16 %v169
    %v222 = vunpack.c.h.b16 %v169
    %v223 = vunpack.c.l.b16 %v170
    %v224 = vunpack.c.h.b16 %v170
    %v225 = vunpack.c.l.b16 %v171
    %v226 = vunpack.c.h.b16 %v171
    %v227 = vunpack.c.l.b16 %v172
    %v228 = vunpack.c.h.b16 %v172
    %v229 = vunpack.c.l.b16 %v173
    %v230 = vunpack.c.h.b16 %v173
    %v231 = vunpack.c.l.b16 %v174
    %v232 = vunpack.c.h.b16 %v174
    %v233 = vunpack.c.l.b16 %v175
    %v234 = vunpack.c.h.b16 %v175
    %v235 = vunpack.c.l.b16 %v176
    %v236 = vunpack.c.h.b16 %v176
    %v237 = vpack.c.b16 %v207, %v205
    %v238 = vpack.c.b16 %v208, %v206
    %v239 = vpack.c.b16 %v211, %v209
    %v240 = vpack.c.b16 %v212, %v210
    %v241 = vpack.c.b16 %v215, %v213
    %v242 = vpack.c.b16 %v216, %v214
    %v243 = vpack.c.b16 %v219, %v217
    %v244 = vpack.c.b16 %v220, %v218
    %v245 = vpack.c.b16 %v223, %v221
    %v246 = vpack.c.b16 %v224, %v222
    %v247 = vpack.c.b16 %v227, %v225
    %v248 = vpack.c.b16 %v228, %v226
    %v249 = vpack.c.b16 %v231, %v229
    %v250 = vpack.c.b16 %v232, %v230
    %v251 = vpack.c.b16 %v235, %v233
    %v252 = vpack.c.b16 %v236, %v234
    %269 = vmatprep.subr.bf16.mxu0 %v238
    %270 = vmatpush1.bf16.msra.mxu0 %v237
    %271 = vmatprep.subr.bf16.mxu0 %v240
    %272 = vmatpush1.bf16.msra.mxu0 %v239
    %273 = vmatprep.subr.bf16.mxu0 %v242
    %274 = vmatpush1.bf16.msra.mxu0 %v241
    %275 = vmatprep.subr.bf16.mxu0 %v244
    %276 = vmatpush1.bf16.msra.mxu0 %v243
    %277 = vmatprep.subr.bf16.mxu0 %v246
    %278 = vmatpush1.bf16.msra.mxu0 %v245
    %279 = vmatprep.subr.bf16.mxu0 %v248
    %280 = vmatpush1.bf16.msra.mxu0 %v247
    %281 = vmatprep.subr.bf16.mxu0 %v250
    %282 = vmatpush1.bf16.msra.mxu0 %v249
    %283 = vmatprep.subr.bf16.mxu0 %v252
    %284 = vmatpush1.bf16.msra.mxu0 %v251
    %285 = vmatprep.subr.bf16.mxu0 0
    %286 = vmatpush1.bf16.msra.mxu0 0
    %287 = vmatprep.subr.bf16.mxu0 0
    %288 = vmatpush1.bf16.msra.mxu0 0
    %289 = vmatprep.subr.bf16.mxu0 0
    %290 = vmatpush1.bf16.msra.mxu0 0
    %291 = vmatprep.subr.bf16.mxu0 0
    %292 = vmatpush1.bf16.msra.mxu0 0
    %293 = vmatprep.subr.bf16.mxu0 0
    %294 = vmatpush1.bf16.msra.mxu0 0
    %295 = vmatprep.subr.bf16.mxu0 0
    %296 = vmatpush1.bf16.msra.mxu0 0
    %297 = vmatprep.subr.bf16.mxu0 0
    %298 = vmatpush1.bf16.msra.mxu0 0
    %299 = vmatprep.subr.bf16.mxu0 0
    %300 = vmatpush1.bf16.msra.mxu0 0
    %301 = vmatprep.mubr.bf16.mxu0 0
    %302 = vmatmul.mubr.bf16.gmra.mrb[0].mxu0 %v160
    %v303 = vpop.f32.mrb[0].mxu0
    %v304 = vadd.f32 %v182, %v303
    %v305 = vpop.f32.mrb[0].mxu0
    %v306 = vadd.f32 %v186, %v305
    %v307 = vpop.f32.mrb[0].mxu0
    %v308 = vadd.f32 %v182, %v307
    %v309 = vpop.f32.mrb[0].mxu0
    %v310 = vadd.f32 %v186, %v309
    %311 = vdwg.mxu0
    %v312 = vmax.f32 %v304, 0.0
    %v313 = vmax.f32 %v306, 0.0
    %v314 = vmax.f32 %v308, 0.0
    %v315 = vmax.f32 %v310, 0.0
    %v316 = vpack.c.bf16 %v314, %v312
    %v317 = vpack.c.bf16 %v315, %v313
    %v318 = vld [vmem:[#allocation4] sm:$0xff]
    %v319 = vld [vmem:[#allocation4 + $0x8] sm:$0xf]
    %v320 = vld [vmem:[#allocation4 + $0xc] sm:$0xff]
    %v321 = vld [vmem:[#allocation4 + $0x14] sm:$0xf]
    %v322 = vld [vmem:[#allocation4 + $0x18] sm:$0xff]
    %v323 = vld [vmem:[#allocation4 + $0x20] sm:$0xf]
    %v324 = vld [vmem:[#allocation4 + $0x24] sm:$0xff]
    %v325 = vld [vmem:[#allocation4 + $0x2c] sm:$0xf]
    %v326 = vld [vmem:[#allocation4 + $0x30] sm:$0xff]
    %v327 = vld [vmem:[#allocation4 + $0x38] sm:$0xf]
    %v328 = vld [vmem:[#allocation4 + $0x3c] sm:$0xff]
    %v329 = vld [vmem:[#allocation4 + $0x44] sm:$0xf]
    %v330 = vld [vmem:[#allocation4 + $0x48] sm:$0xff]
    %v331 = vld [vmem:[#allocation4 + $0x50] sm:$0xf]
    %v332 = vld [vmem:[#allocation4 + $0x54] sm:$0xff]
    %v333 = vld [vmem:[#allocation4 + $0x5c] sm:$0xf]
    %v334 = vld [vmem:[#allocation4 + $0x60] sm:$0xff]
    %v335 = vld [vmem:[#allocation4 + $0x68] sm:$0xf]
    %v336 = vld [vmem:[#allocation4 + $0x6c] sm:$0xff]
    %v337 = vld [vmem:[#allocation4 + $0x74] sm:$0xf]
    %v338 = vld [vmem:[#allocation4 + $0x78] sm:$0xff]
    %v339 = vld [vmem:[#allocation4 + $0x80] sm:$0xf]
    %v340 = vld [vmem:[#allocation4 + $0x84] sm:$0xff]
    %v341 = vld [vmem:[#allocation4 + $0x8c] sm:$0xf]
    %v342 = vld [vmem:[#allocation4 + $0x90] sm:$0xff]
    %v343 = vld [vmem:[#allocation4 + $0x98] sm:$0xf]
    %v344 = vld [vmem:[#allocation4 + $0x9c] sm:$0xff]
    %v345 = vld [vmem:[#allocation4 + $0xa4] sm:$0xf]
    %v346 = vld [vmem:[#allocation4 + $0xa8] sm:$0xff]
    %v347 = vld [vmem:[#allocation4 + $0xb0] sm:$0xf]
    %v348 = vld [vmem:[#allocation4 + $0xb4] sm:$0xff]
    %v349 = vld [vmem:[#allocation4 + $0xbc] sm:$0xf]
    %v350 = vld [vmem:[#allocation4 + $0xc0] sm:$0xff]
    %v351 = vld [vmem:[#allocation4 + $0xc8] sm:$0xf]
    %v352 = vld [vmem:[#allocation4 + $0xcc] sm:$0xff]
    %v353 = vld [vmem:[#allocation4 + $0xd4] sm:$0xf]
    %v354 = vld [vmem:[#allocation4 + $0xd8] sm:$0xff]
    %v355 = vld [vmem:[#allocation4 + $0xe0] sm:$0xf]
    %v356 = vld [vmem:[#allocation4 + $0xe4] sm:$0xff]
    %v357 = vld [vmem:[#allocation4 + $0xec] sm:$0xf]
    %v358 = vld [vmem:[#allocation4 + $0xf0] sm:$0xff]
    %v359 = vld [vmem:[#allocation4 + $0xf8] sm:$0xf]
    %v360 = vld [vmem:[#allocation4 + $0xfc] sm:$0xff]
    %v361 = vld [vmem:[#allocation4 + $0x104] sm:$0xf]
    %v362 = vld [vmem:[#allocation4 + $0x108] sm:$0xff]
    %v363 = vld [vmem:[#allocation4 + $0x110] sm:$0xf]
    %v364 = vld [vmem:[#allocation4 + $0x114] sm:$0xff]
    %v365 = vld [vmem:[#allocation4 + $0x11c] sm:$0xf]
    %v366 = vld [vmem:[#allocation4 + $0x120] sm:$0xff]
    %v367 = vld [vmem:[#allocation4 + $0x128] sm:$0xf]
    %v368 = vld [vmem:[#allocation4 + $0x12c] sm:$0xff]
    %v369 = vld [vmem:[#allocation4 + $0x134] sm:$0xf]
    %v370 = vld [vmem:[#allocation4 + $0x138] sm:$0xff]
    %v371 = vld [vmem:[#allocation4 + $0x140] sm:$0xf]
    %v372 = vld [vmem:[#allocation4 + $0x144] sm:$0xff]
    %v373 = vld [vmem:[#allocation4 + $0x14c] sm:$0xf]
    %v374 = vld [vmem:[#allocation4 + $0x150] sm:$0xff]
    %v375 = vld [vmem:[#allocation4 + $0x158] sm:$0xf]
    %v376 = vld [vmem:[#allocation4 + $0x15c] sm:$0xff]
    %v377 = vld [vmem:[#allocation4 + $0x164] sm:$0xf]
    %v378 = vld [vmem:[#allocation4 + $0x168] sm:$0xff]
    %v379 = vld [vmem:[#allocation4 + $0x170] sm:$0xf]
    %v380 = vld [vmem:[#allocation4 + $0x174] sm:$0xff]
    %v381 = vld [vmem:[#allocation4 + $0x17c] sm:$0xf]
    %v382 = vld [vmem:[%s6] sm:$0x7]
    %v384 = vlaneseq
    %v385 = vshrl.u32 %v384, 7
    %v386 = vsub.s32 0, %v385
    %v387 = vrot.slane %v382, %v386
    %v388 = vlaneseq
    %v389 = vshrl.u32 %v388, 7
    %v390 = vsub.s32 1, %v389
    %v391 = vrot.slane %v382, %v390
    %v392 = vlaneseq
    %v393 = vshrl.u32 %v392, 7
    %v394 = vsub.s32 2, %v393
    %v395 = vrot.slane %v382, %v394
    %v463 = vunpack.c.l.b16 %v318
    %v464 = vunpack.c.h.b16 %v318
    %v465 = vunpack.c.l.b16 %v319
    %v466 = vunpack.c.l.b16 %v320
    %v467 = vunpack.c.h.b16 %v320
    %v468 = vunpack.c.l.b16 %v321
    %v469 = vunpack.c.l.b16 %v322
    %v470 = vunpack.c.h.b16 %v322
    %v471 = vunpack.c.l.b16 %v323
    %v472 = vunpack.c.l.b16 %v324
    %v473 = vunpack.c.h.b16 %v324
    %v474 = vunpack.c.l.b16 %v325
    %v475 = vunpack.c.l.b16 %v326
    %v476 = vunpack.c.h.b16 %v326
    %v477 = vunpack.c.l.b16 %v327
    %v478 = vunpack.c.l.b16 %v328
    %v479 = vunpack.c.h.b16 %v328
    %v480 = vunpack.c.l.b16 %v329
    %v481 = vunpack.c.l.b16 %v330
    %v482 = vunpack.c.h.b16 %v330
    %v483 = vunpack.c.l.b16 %v331
    %v484 = vunpack.c.l.b16 %v332
    %v485 = vunpack.c.h.b16 %v332
    %v486 = vunpack.c.l.b16 %v333
    %v487 = vunpack.c.l.b16 %v334
    %v488 = vunpack.c.h.b16 %v334
    %v489 = vunpack.c.l.b16 %v335
    %v490 = vunpack.c.l.b16 %v336
    %v491 = vunpack.c.h.b16 %v336
    %v492 = vunpack.c.l.b16 %v337
    %v493 = vunpack.c.l.b16 %v338
    %v494 = vunpack.c.h.b16 %v338
    %v495 = vunpack.c.l.b16 %v339
    %v496 = vunpack.c.l.b16 %v340
    %v497 = vunpack.c.h.b16 %v340
    %v498 = vunpack.c.l.b16 %v341
    %v499 = vunpack.c.l.b16 %v342
    %v500 = vunpack.c.h.b16 %v342
    %v501 = vunpack.c.l.b16 %v343
    %v502 = vunpack.c.l.b16 %v344
    %v503 = vunpack.c.h.b16 %v344
    %v504 = vunpack.c.l.b16 %v345
    %v505 = vunpack.c.l.b16 %v346
    %v506 = vunpack.c.h.b16 %v346
    %v507 = vunpack.c.l.b16 %v347
    %v508 = vunpack.c.l.b16 %v348
    %v509 = vunpack.c.h.b16 %v348
    %v510 = vunpack.c.l.b16 %v349
    %v511 = vunpack.c.l.b16 %v350
    %v512 = vunpack.c.h.b16 %v350
    %v513 = vunpack.c.l.b16 %v351
    %v514 = vunpack.c.l.b16 %v352
    %v515 = vunpack.c.h.b16 %v352
    %v516 = vunpack.c.l.b16 %v353
    %v517 = vunpack.c.l.b16 %v354
    %v518 = vunpack.c.h.b16 %v354
    %v519 = vunpack.c.l.b16 %v355
    %v520 = vunpack.c.l.b16 %v356
    %v521 = vunpack.c.h.b16 %v356
    %v522 = vunpack.c.l.b16 %v357
    %v523 = vunpack.c.l.b16 %v358
    %v524 = vunpack.c.h.b16 %v358
    %v525 = vunpack.c.l.b16 %v359
    %v526 = vunpack.c.l.b16 %v360
    %v527 = vunpack.c.h.b16 %v360
    %v528 = vunpack.c.l.b16 %v361
    %v529 = vunpack.c.l.b16 %v362
    %v530 = vunpack.c.h.b16 %v362
    %v531 = vunpack.c.l.b16 %v363
    %v532 = vunpack.c.l.b16 %v364
    %v533 = vunpack.c.h.b16 %v364
    %v534 = vunpack.c.l.b16 %v365
    %v535 = vunpack.c.l.b16 %v366
    %v536 = vunpack.c.h.b16 %v366
    %v537 = vunpack.c.l.b16 %v367
    %v538 = vunpack.c.l.b16 %v368
    %v539 = vunpack.c.h.b16 %v368
    %v540 = vunpack.c.l.b16 %v369
    %v541 = vunpack.c.l.b16 %v370
    %v542 = vunpack.c.h.b16 %v370
    %v543 = vunpack.c.l.b16 %v371
    %v544 = vunpack.c.l.b16 %v372
    %v545 = vunpack.c.h.b16 %v372
    %v546 = vunpack.c.l.b16 %v373
    %v547 = vunpack.c.l.b16 %v374
    %v548 = vunpack.c.h.b16 %v374
    %v549 = vunpack.c.l.b16 %v375
    %v550 = vunpack.c.l.b16 %v376
    %v551 = vunpack.c.h.b16 %v376
    %v552 = vunpack.c.l.b16 %v377
    %v553 = vunpack.c.l.b16 %v378
    %v554 = vunpack.c.h.b16 %v378
    %v555 = vunpack.c.l.b16 %v379
    %v556 = vunpack.c.l.b16 %v380
    %v557 = vunpack.c.h.b16 %v380
    %v558 = vunpack.c.l.b16 %v381
    %v559 = vpack.c.b16 %v466, %v463
    %v560 = vpack.c.b16 %v467, %v464
    %v561 = vpack.c.b16 %v468, %v465
    %v562 = vpack.c.b16 %v472, %v469
    %v563 = vpack.c.b16 %v473, %v470
    %v564 = vpack.c.b16 %v474, %v471
    %v565 = vpack.c.b16 %v478, %v475
    %v566 = vpack.c.b16 %v479, %v476
    %v567 = vpack.c.b16 %v480, %v477
    %v568 = vpack.c.b16 %v484, %v481
    %v569 = vpack.c.b16 %v485, %v482
    %v570 = vpack.c.b16 %v486, %v483
    %v571 = vpack.c.b16 %v490, %v487
    %v572 = vpack.c.b16 %v491, %v488
    %v573 = vpack.c.b16 %v492, %v489
    %v574 = vpack.c.b16 %v496, %v493
    %v575 = vpack.c.b16 %v497, %v494
    %v576 = vpack.c.b16 %v498, %v495
    %v577 = vpack.c.b16 %v502, %v499
    %v578 = vpack.c.b16 %v503, %v500
    %v579 = vpack.c.b16 %v504, %v501
    %v580 = vpack.c.b16 %v508, %v505
    %v581 = vpack.c.b16 %v509, %v506
    %v582 = vpack.c.b16 %v510, %v507
    %v583 = vpack.c.b16 %v514, %v511
    %v584 = vpack.c.b16 %v515, %v512
    %v585 = vpack.c.b16 %v516, %v513
    %v586 = vpack.c.b16 %v520, %v517
    %v587 = vpack.c.b16 %v521, %v518
    %v588 = vpack.c.b16 %v522, %v519
    %v589 = vpack.c.b16 %v526, %v523
    %v590 = vpack.c.b16 %v527, %v524
    %v591 = vpack.c.b16 %v528, %v525
    %v592 = vpack.c.b16 %v532, %v529
    %v593 = vpack.c.b16 %v533, %v530
    %v594 = vpack.c.b16 %v534, %v531
    %v595 = vpack.c.b16 %v538, %v535
    %v596 = vpack.c.b16 %v539, %v536
    %v597 = vpack.c.b16 %v540, %v537
    %v598 = vpack.c.b16 %v544, %v541
    %v599 = vpack.c.b16 %v545, %v542
    %v600 = vpack.c.b16 %v546, %v543
    %v601 = vpack.c.b16 %v550, %v547
    %v602 = vpack.c.b16 %v551, %v548
    %v603 = vpack.c.b16 %v552, %v549
    %v604 = vpack.c.b16 %v556, %v553
    %v605 = vpack.c.b16 %v557, %v554
    %v606 = vpack.c.b16 %v558, %v555
    %655 = vmatprep.subr.bf16.mxu0 %v560
    %656 = vmatpush1.bf16.msra.mxu0 %v559
    %657 = vmatprep.subr.bf16.mxu0 %v563
    %658 = vmatpush1.bf16.msra.mxu0 %v562
    %659 = vmatprep.subr.bf16.mxu0 %v566
    %660 = vmatpush1.bf16.msra.mxu0 %v565
    %661 = vmatprep.subr.bf16.mxu0 %v569
    %662 = vmatpush1.bf16.msra.mxu0 %v568
    %663 = vmatprep.subr.bf16.mxu0 %v572
    %664 = vmatpush1.bf16.msra.mxu0 %v571
    %665 = vmatprep.subr.bf16.mxu0 %v575
    %666 = vmatpush1.bf16.msra.mxu0 %v574
    %667 = vmatprep.subr.bf16.mxu0 %v578
    %668 = vmatpush1.bf16.msra.mxu0 %v577
    %669 = vmatprep.subr.bf16.mxu0 %v581
    %670 = vmatpush1.bf16.msra.mxu0 %v580
    %671 = vmatprep.subr.bf16.mxu0 %v584
    %672 = vmatpush1.bf16.msra.mxu0 %v583
    %673 = vmatprep.subr.bf16.mxu0 %v587
    %674 = vmatpush1.bf16.msra.mxu0 %v586
    %675 = vmatprep.subr.bf16.mxu0 %v590
    %676 = vmatpush1.bf16.msra.mxu0 %v589
    %677 = vmatprep.subr.bf16.mxu0 %v593
    %678 = vmatpush1.bf16.msra.mxu0 %v592
    %679 = vmatprep.subr.bf16.mxu0 %v596
    %680 = vmatpush1.bf16.msra.mxu0 %v595
    %681 = vmatprep.subr.bf16.mxu0 %v599
    %682 = vmatpush1.bf16.msra.mxu0 %v598
    %683 = vmatprep.subr.bf16.mxu0 %v602
    %684 = vmatpush1.bf16.msra.mxu0 %v601
    %685 = vmatprep.subr.bf16.mxu0 %v605
    %686 = vmatpush1.bf16.msra.mxu0 %v604
    %687 = vmatprep.mubr.bf16.mxu0 %v317
    %688 = vmatmul.mubr.bf16.gmra.mrb[0].mxu0 %v316
    %v689 = vpop.f32.mrb[0].mxu0
    %v690 = vadd.f32 %v387, %v689
    %v691 = vpop.f32.mrb[0].mxu0
    %v692 = vadd.f32 %v391, %v691
    %v693 = vpop.f32.mrb[0].mxu0
    %v694 = vadd.f32 %v387, %v693
    %v695 = vpop.f32.mrb[0].mxu0
    %v696 = vadd.f32 %v391, %v695
    %697 = vdwg.mxu0
    %698 = vmatprep.subr.bf16.mxu0 0
    %699 = vmatpush1.bf16.msra.mxu0 %v561
    %700 = vmatprep.subr.bf16.mxu0 0
    %701 = vmatpush1.bf16.msra.mxu0 %v564
    %702 = vmatprep.subr.bf16.mxu0 0
    %703 = vmatpush1.bf16.msra.mxu0 %v567
    %704 = vmatprep.subr.bf16.mxu0 0
    %705 = vmatpush1.bf16.msra.mxu0 %v570
    %706 = vmatprep.subr.bf16.mxu0 0
    %707 = vmatpush1.bf16.msra.mxu0 %v573
    %708 = vmatprep.subr.bf16.mxu0 0
    %709 = vmatpush1.bf16.msra.mxu0 %v576
    %710 = vmatprep.subr.bf16.mxu0 0
    %711 = vmatpush1.bf16.msra.mxu0 %v579
    %712 = vmatprep.subr.bf16.mxu0 0
    %713 = vmatpush1.bf16.msra.mxu0 %v582
    %714 = vmatprep.subr.bf16.mxu0 0
    %715 = vmatpush1.bf16.msra.mxu0 %v585
    %716 = vmatprep.subr.bf16.mxu0 0
    %717 = vmatpush1.bf16.msra.mxu0 %v588
    %718 = vmatprep.subr.bf16.mxu0 0
    %719 = vmatpush1.bf16.msra.mxu0 %v591
    %720 = vmatprep.subr.bf16.mxu0 0
    %721 = vmatpush1.bf16.msra.mxu0 %v594
    %722 = vmatprep.subr.bf16.mxu0 0
    %723 = vmatpush1.bf16.msra.mxu0 %v597
    %724 = vmatprep.subr.bf16.mxu0 0
    %725 = vmatpush1.bf16.msra.mxu0 %v600
    %726 = vmatprep.subr.bf16.mxu0 0
    %727 = vmatpush1.bf16.msra.mxu0 %v603
    %728 = vmatprep.subr.bf16.mxu0 0
    %729 = vmatpush1.bf16.msra.mxu0 %v606
    %730 = vmatprep.mubr.bf16.mxu0 %v317
    %731 = vmatmul.mubr.bf16.gmra.mrb[0].mxu0 %v316
    %v732 = vpop.f32.mrb[0].mxu0
    %v733 = vadd.f32 %v395, %v732
    %v734 = vpop.f32.mrb[0].mxu0
    %v735 = vpop.f32.mrb[0].mxu0
    %v736 = vadd.f32 %v395, %v735
    %v737 = vpop.f32.mrb[0].mxu0
    %738 = vdwg.mxu0
    %v739 = vmax.f32 %v690, 0.0
    %v740 = vmax.f32 %v692, 0.0
    %v741 = vmax.f32 %v733, 0.0
    %v742 = vmax.f32 %v694, 0.0
    %v743 = vmax.f32 %v696, 0.0
    %v744 = vmax.f32 %v736, 0.0
    %v745 = vpack.c.bf16 %v742, %v739
    %v746 = vpack.c.bf16 %v743, %v740
    %v747 = vpack.c.bf16 %v744, %v741
    %v748 = vld [vmem:[#allocation6] sm:$0xff]
    %v749 = vld [vmem:[#allocation6 + $0x8] sm:$0xff]
    %v750 = vld [vmem:[#allocation6 + $0x10] sm:$0xff]
    %v751 = vld [vmem:[#allocation6 + $0x18] sm:$0xff]
    %v752 = vld [vmem:[#allocation6 + $0x20] sm:$0xff]
    %v753 = vld [vmem:[#allocation6 + $0x28] sm:$0xff]
    %v754 = vld [vmem:[#allocation6 + $0x30] sm:$0xff]
    %v755 = vld [vmem:[#allocation6 + $0x38] sm:$0xff]
    %v756 = vld [vmem:[#allocation6 + $0x40] sm:$0xff]
    %v757 = vld [vmem:[#allocation6 + $0x48] sm:$0xff]
    %v758 = vld [vmem:[#allocation6 + $0x50] sm:$0xff]
    %v759 = vld [vmem:[#allocation6 + $0x58] sm:$0xff]
    %v760 = vld [vmem:[#allocation6 + $0x60] sm:$0xff]
    %v761 = vld [vmem:[#allocation6 + $0x68] sm:$0xff]
    %v762 = vld [vmem:[#allocation6 + $0x70] sm:$0xff]
    %v763 = vld [vmem:[#allocation6 + $0x78] sm:$0xff]
    %v764 = vld [vmem:[#allocation6 + $0x80] sm:$0xff]
    %v765 = vld [vmem:[#allocation6 + $0x88] sm:$0xff]
    %v766 = vld [vmem:[#allocation6 + $0x90] sm:$0xff]
    %v767 = vld [vmem:[#allocation6 + $0x98] sm:$0xff]
    %v768 = vld [vmem:[#allocation6 + $0xa0] sm:$0xff]
    %v769 = vld [vmem:[#allocation6 + $0xa8] sm:$0xff]
    %v770 = vld [vmem:[#allocation6 + $0xb0] sm:$0xff]
    %v771 = vld [vmem:[#allocation6 + $0xb8] sm:$0xff]
    %v772 = vld [vmem:[#allocation6 + $0xc0] sm:$0xff]
    %v773 = vld [vmem:[#allocation6 + $0xc8] sm:$0xff]
    %v774 = vld [vmem:[#allocation6 + $0xd0] sm:$0xff]
    %v775 = vld [vmem:[#allocation6 + $0xd8] sm:$0xff]
    %v776 = vld [vmem:[#allocation6 + $0xe0] sm:$0xff]
    %v777 = vld [vmem:[#allocation6 + $0xe8] sm:$0xff]
    %v778 = vld [vmem:[#allocation6 + $0xf0] sm:$0xff]
    %v779 = vld [vmem:[#allocation6 + $0xf8] sm:$0xff]
    %v780 = vld [vmem:[#allocation6 + $0x100] sm:$0xff]
    %v781 = vld [vmem:[#allocation6 + $0x108] sm:$0xff]
    %v782 = vld [vmem:[#allocation6 + $0x110] sm:$0xff]
    %v783 = vld [vmem:[#allocation6 + $0x118] sm:$0xff]
    %v784 = vld [vmem:[#allocation6 + $0x120] sm:$0xff]
    %v785 = vld [vmem:[#allocation6 + $0x128] sm:$0xff]
    %v786 = vld [vmem:[#allocation6 + $0x130] sm:$0xff]
    %v787 = vld [vmem:[#allocation6 + $0x138] sm:$0xff]
    %v788 = vld [vmem:[#allocation6 + $0x140] sm:$0xff]
    %v789 = vld [vmem:[#allocation6 + $0x148] sm:$0xff]
    %v790 = vld [vmem:[#allocation6 + $0x150] sm:$0xff]
    %v791 = vld [vmem:[#allocation6 + $0x158] sm:$0xff]
    %v792 = vld [vmem:[#allocation6 + $0x160] sm:$0xff]
    %v793 = vld [vmem:[#allocation6 + $0x168] sm:$0xff]
    %v794 = vld [vmem:[#allocation6 + $0x170] sm:$0xff]
    %v795 = vld [vmem:[#allocation6 + $0x178] sm:$0xff]
    %v796 = vld [vmem:[#allocation6 + $0x180] sm:$0xff]
    %v797 = vld [vmem:[#allocation6 + $0x188] sm:$0xff]
    %v798 = vld [vmem:[#allocation6 + $0x190] sm:$0xff]
    %v799 = vld [vmem:[#allocation6 + $0x198] sm:$0xff]
    %v800 = vld [vmem:[#allocation6 + $0x1a0] sm:$0xff]
    %v801 = vld [vmem:[#allocation6 + $0x1a8] sm:$0xff]
    %v802 = vld [vmem:[#allocation6 + $0x1b0] sm:$0xff]
    %v803 = vld [vmem:[#allocation6 + $0x1b8] sm:$0xff]
    %v804 = vld [vmem:[#allocation6 + $0x1c0] sm:$0xff]
    %v805 = vld [vmem:[#allocation6 + $0x1c8] sm:$0xff]
    %v806 = vld [vmem:[#allocation6 + $0x1d0] sm:$0xff]
    %v807 = vld [vmem:[#allocation6 + $0x1d8] sm:$0xff]
    %v808 = vld [vmem:[#allocation6 + $0x1e0] sm:$0xff]
    %v809 = vld [vmem:[#allocation6 + $0x1e8] sm:$0xff]
    %v810 = vld [vmem:[#allocation6 + $0x1f0] sm:$0xff]
    %v811 = vld [vmem:[#allocation6 + $0x1f8] sm:$0xff]
    %v812 = vld [vmem:[#allocation6 + $0x200] sm:$0xff]
    %v813 = vld [vmem:[#allocation6 + $0x208] sm:$0xff]
    %v814 = vld [vmem:[#allocation6 + $0x210] sm:$0xff]
    %v815 = vld [vmem:[#allocation6 + $0x218] sm:$0xff]
    %v816 = vld [vmem:[#allocation6 + $0x220] sm:$0xff]
    %v817 = vld [vmem:[#allocation6 + $0x228] sm:$0xff]
    %v818 = vld [vmem:[#allocation6 + $0x230] sm:$0xff]
    %v819 = vld [vmem:[#allocation6 + $0x238] sm:$0xff]
    %v820 = vld [vmem:[#allocation6 + $0x240] sm:$0xff]
    %v821 = vld [vmem:[#allocation6 + $0x248] sm:$0xff]
    %v822 = vld [vmem:[#allocation6 + $0x250] sm:$0xff]
    %v823 = vld [vmem:[#allocation6 + $0x258] sm:$0xff]
    %v824 = vld [vmem:[#allocation6 + $0x260] sm:$0xff]
    %v825 = vld [vmem:[#allocation6 + $0x268] sm:$0xff]
    %v826 = vld [vmem:[#allocation6 + $0x270] sm:$0xff]
    %v827 = vld [vmem:[#allocation6 + $0x278] sm:$0xff]
    %v828 = vld [vmem:[#allocation6 + $0x280] sm:$0xff]
    %v829 = vld [vmem:[#allocation6 + $0x288] sm:$0xff]
    %v830 = vld [vmem:[#allocation6 + $0x290] sm:$0xff]
    %v831 = vld [vmem:[#allocation6 + $0x298] sm:$0xff]
    %v832 = vld [vmem:[#allocation6 + $0x2a0] sm:$0xff]
    %v833 = vld [vmem:[#allocation6 + $0x2a8] sm:$0xff]
    %v834 = vld [vmem:[#allocation6 + $0x2b0] sm:$0xff]
    %v835 = vld [vmem:[#allocation6 + $0x2b8] sm:$0xff]
    %v836 = vld [vmem:[#allocation6 + $0x2c0] sm:$0xff]
    %v837 = vld [vmem:[#allocation6 + $0x2c8] sm:$0xff]
    %v838 = vld [vmem:[#allocation6 + $0x2d0] sm:$0xff]
    %v839 = vld [vmem:[#allocation6 + $0x2d8] sm:$0xff]
    %v840 = vld [vmem:[#allocation6 + $0x2e0] sm:$0xff]
    %v841 = vld [vmem:[#allocation6 + $0x2e8] sm:$0xff]
    %v842 = vld [vmem:[#allocation6 + $0x2f0] sm:$0xff]
    %v843 = vld [vmem:[#allocation6 + $0x2f8] sm:$0xff]
    %v844 = vld [vmem:[%s8] sm:$0xf]
    %v846 = vlaneseq
    %v847 = vshrl.u32 %v846, 7
    %v848 = vsub.s32 0, %v847
    %v849 = vrot.slane %v844, %v848
    %v850 = vlaneseq
    %v851 = vshrl.u32 %v850, 7
    %v852 = vsub.s32 1, %v851
    %v853 = vrot.slane %v844, %v852
    %v854 = vlaneseq
    %v855 = vshrl.u32 %v854, 7
    %v856 = vsub.s32 2, %v855
    %v857 = vrot.slane %v844, %v856
    %v858 = vlaneseq
    %v859 = vshrl.u32 %v858, 7
    %v860 = vsub.s32 3, %v859
    %v861 = vrot.slane %v844, %v860
    %v962 = vunpack.c.l.b16 %v748
    %v963 = vunpack.c.h.b16 %v748
    %v964 = vunpack.c.l.b16 %v749
    %v965 = vunpack.c.h.b16 %v749
    %v966 = vunpack.c.l.b16 %v750
    %v967 = vunpack.c.h.b16 %v750
    %v968 = vunpack.c.l.b16 %v751
    %v969 = vunpack.c.h.b16 %v751
    %v970 = vunpack.c.l.b16 %v752
    %v971 = vunpack.c.h.b16 %v752
    %v972 = vunpack.c.l.b16 %v753
    %v973 = vunpack.c.h.b16 %v753
    %v974 = vunpack.c.l.b16 %v754
    %v975 = vunpack.c.h.b16 %v754
    %v976 = vunpack.c.l.b16 %v755
    %v977 = vunpack.c.h.b16 %v755
    %v978 = vunpack.c.l.b16 %v756
    %v979 = vunpack.c.h.b16 %v756
    %v980 = vunpack.c.l.b16 %v757
    %v981 = vunpack.c.h.b16 %v757
    %v982 = vunpack.c.l.b16 %v758
    %v983 = vunpack.c.h.b16 %v758
    %v984 = vunpack.c.l.b16 %v759
    %v985 = vunpack.c.h.b16 %v759
    %v986 = vunpack.c.l.b16 %v760
    %v987 = vunpack.c.h.b16 %v760
    %v988 = vunpack.c.l.b16 %v761
    %v989 = vunpack.c.h.b16 %v761
    %v990 = vunpack.c.l.b16 %v762
    %v991 = vunpack.c.h.b16 %v762
    %v992 = vunpack.c.l.b16 %v763
    %v993 = vunpack.c.h.b16 %v763
    %v994 = vunpack.c.l.b16 %v764
    %v995 = vunpack.c.h.b16 %v764
    %v996 = vunpack.c.l.b16 %v765
    %v997 = vunpack.c.h.b16 %v765
    %v998 = vunpack.c.l.b16 %v766
    %v999 = vunpack.c.h.b16 %v766
    %v1000 = vunpack.c.l.b16 %v767
    %v1001 = vunpack.c.h.b16 %v767
    %v1002 = vunpack.c.l.b16 %v768
    %v1003 = vunpack.c.h.b16 %v768
    %v1004 = vunpack.c.l.b16 %v769
    %v1005 = vunpack.c.h.b16 %v769
    %v1006 = vunpack.c.l.b16 %v770
    %v1007 = vunpack.c.h.b16 %v770
    %v1008 = vunpack.c.l.b16 %v771
    %v1009 = vunpack.c.h.b16 %v771
    %v1010 = vunpack.c.l.b16 %v772
    %v1011 = vunpack.c.h.b16 %v772
    %v1012 = vunpack.c.l.b16 %v773
    %v1013 = vunpack.c.h.b16 %v773
    %v1014 = vunpack.c.l.b16 %v774
    %v1015 = vunpack.c.h.b16 %v774
    %v1016 = vunpack.c.l.b16 %v775
    %v1017 = vunpack.c.h.b16 %v775
    %v1018 = vunpack.c.l.b16 %v776
    %v1019 = vunpack.c.h.b16 %v776
    %v1020 = vunpack.c.l.b16 %v777
    %v1021 = vunpack.c.h.b16 %v777
    %v1022 = vunpack.c.l.b16 %v778
    %v1023 = vunpack.c.h.b16 %v778
    %v1024 = vunpack.c.l.b16 %v779
    %v1025 = vunpack.c.h.b16 %v779
    %v1026 = vunpack.c.l.b16 %v780
    %v1027 = vunpack.c.h.b16 %v780
    %v1028 = vunpack.c.l.b16 %v781
    %v1029 = vunpack.c.h.b16 %v781
    %v1030 = vunpack.c.l.b16 %v782
    %v1031 = vunpack.c.h.b16 %v782
    %v1032 = vunpack.c.l.b16 %v783
    %v1033 = vunpack.c.h.b16 %v783
    %v1034 = vunpack.c.l.b16 %v784
    %v1035 = vunpack.c.h.b16 %v784
    %v1036 = vunpack.c.l.b16 %v785
    %v1037 = vunpack.c.h.b16 %v785
    %v1038 = vunpack.c.l.b16 %v786
    %v1039 = vunpack.c.h.b16 %v786
    %v1040 = vunpack.c.l.b16 %v787
    %v1041 = vunpack.c.h.b16 %v787
    %v1042 = vunpack.c.l.b16 %v788
    %v1043 = vunpack.c.h.b16 %v788
    %v1044 = vunpack.c.l.b16 %v789
    %v1045 = vunpack.c.h.b16 %v789
    %v1046 = vunpack.c.l.b16 %v790
    %v1047 = vunpack.c.h.b16 %v790
    %v1048 = vunpack.c.l.b16 %v791
    %v1049 = vunpack.c.h.b16 %v791
    %v1050 = vunpack.c.l.b16 %v792
    %v1051 = vunpack.c.h.b16 %v792
    %v1052 = vunpack.c.l.b16 %v793
    %v1053 = vunpack.c.h.b16 %v793
    %v1054 = vunpack.c.l.b16 %v794
    %v1055 = vunpack.c.h.b16 %v794
    %v1056 = vunpack.c.l.b16 %v795
    %v1057 = vunpack.c.h.b16 %v795
    %v1058 = vunpack.c.l.b16 %v796
    %v1059 = vunpack.c.h.b16 %v796
    %v1060 = vunpack.c.l.b16 %v797
    %v1061 = vunpack.c.h.b16 %v797
    %v1062 = vunpack.c.l.b16 %v798
    %v1063 = vunpack.c.h.b16 %v798
    %v1064 = vunpack.c.l.b16 %v799
    %v1065 = vunpack.c.h.b16 %v799
    %v1066 = vunpack.c.l.b16 %v800
    %v1067 = vunpack.c.h.b16 %v800
    %v1068 = vunpack.c.l.b16 %v801
    %v1069 = vunpack.c.h.b16 %v801
    %v1070 = vunpack.c.l.b16 %v802
    %v1071 = vunpack.c.h.b16 %v802
    %v1072 = vunpack.c.l.b16 %v803
    %v1073 = vunpack.c.h.b16 %v803
    %v1074 = vunpack.c.l.b16 %v804
    %v1075 = vunpack.c.h.b16 %v804
    %v1076 = vunpack.c.l.b16 %v805
    %v1077 = vunpack.c.h.b16 %v805
    %v1078 = vunpack.c.l.b16 %v806
    %v1079 = vunpack.c.h.b16 %v806
    %v1080 = vunpack.c.l.b16 %v807
    %v1081 = vunpack.c.h.b16 %v807
    %v1082 = vunpack.c.l.b16 %v808
    %v1083 = vunpack.c.h.b16 %v808
    %v1084 = vunpack.c.l.b16 %v809
    %v1085 = vunpack.c.h.b16 %v809
    %v1086 = vunpack.c.l.b16 %v810
    %v1087 = vunpack.c.h.b16 %v810
    %v1088 = vunpack.c.l.b16 %v811
    %v1089 = vunpack.c.h.b16 %v811
    %v1090 = vunpack.c.l.b16 %v812
    %v1091 = vunpack.c.h.b16 %v812
    %v1092 = vunpack.c.l.b16 %v813
    %v1093 = vunpack.c.h.b16 %v813
    %v1094 = vunpack.c.l.b16 %v814
    %v1095 = vunpack.c.h.b16 %v814
    %v1096 = vunpack.c.l.b16 %v815
    %v1097 = vunpack.c.h.b16 %v815
    %v1098 = vunpack.c.l.b16 %v816
    %v1099 = vunpack.c.h.b16 %v816
    %v1100 = vunpack.c.l.b16 %v817
    %v1101 = vunpack.c.h.b16 %v817
    %v1102 = vunpack.c.l.b16 %v818
    %v1103 = vunpack.c.h.b16 %v818
    %v1104 = vunpack.c.l.b16 %v819
    %v1105 = vunpack.c.h.b16 %v819
    %v1106 = vunpack.c.l.b16 %v820
    %v1107 = vunpack.c.h.b16 %v820
    %v1108 = vunpack.c.l.b16 %v821
    %v1109 = vunpack.c.h.b16 %v821
    %v1110 = vunpack.c.l.b16 %v822
    %v1111 = vunpack.c.h.b16 %v822
    %v1112 = vunpack.c.l.b16 %v823
    %v1113 = vunpack.c.h.b16 %v823
    %v1114 = vunpack.c.l.b16 %v824
    %v1115 = vunpack.c.h.b16 %v824
    %v1116 = vunpack.c.l.b16 %v825
    %v1117 = vunpack.c.h.b16 %v825
    %v1118 = vunpack.c.l.b16 %v826
    %v1119 = vunpack.c.h.b16 %v826
    %v1120 = vunpack.c.l.b16 %v827
    %v1121 = vunpack.c.h.b16 %v827
    %v1122 = vunpack.c.l.b16 %v828
    %v1123 = vunpack.c.h.b16 %v828
    %v1124 = vunpack.c.l.b16 %v829
    %v1125 = vunpack.c.h.b16 %v829
    %v1126 = vunpack.c.l.b16 %v830
    %v1127 = vunpack.c.h.b16 %v830
    %v1128 = vunpack.c.l.b16 %v831
    %v1129 = vunpack.c.h.b16 %v831
    %v1130 = vunpack.c.l.b16 %v832
    %v1131 = vunpack.c.h.b16 %v832
    %v1132 = vunpack.c.l.b16 %v833
    %v1133 = vunpack.c.h.b16 %v833
    %v1134 = vunpack.c.l.b16 %v834
    %v1135 = vunpack.c.h.b16 %v834
    %v1136 = vunpack.c.l.b16 %v835
    %v1137 = vunpack.c.h.b16 %v835
    %v1138 = vunpack.c.l.b16 %v836
    %v1139 = vunpack.c.h.b16 %v836
    %v1140 = vunpack.c.l.b16 %v837
    %v1141 = vunpack.c.h.b16 %v837
    %v1142 = vunpack.c.l.b16 %v838
    %v1143 = vunpack.c.h.b16 %v838
    %v1144 = vunpack.c.l.b16 %v839
    %v1145 = vunpack.c.h.b16 %v839
    %v1146 = vunpack.c.l.b16 %v840
    %v1147 = vunpack.c.h.b16 %v840
    %v1148 = vunpack.c.l.b16 %v841
    %v1149 = vunpack.c.h.b16 %v841
    %v1150 = vunpack.c.l.b16 %v842
    %v1151 = vunpack.c.h.b16 %v842
    %v1152 = vunpack.c.l.b16 %v843
    %v1153 = vunpack.c.h.b16 %v843
    %v1154 = vpack.c.b16 %v966, %v962
    %v1155 = vpack.c.b16 %v967, %v963
    %v1156 = vpack.c.b16 %v968, %v964
    %v1157 = vpack.c.b16 %v969, %v965
    %v1158 = vpack.c.b16 %v974, %v970
    %v1159 = vpack.c.b16 %v975, %v971
    %v1160 = vpack.c.b16 %v976, %v972
    %v1161 = vpack.c.b16 %v977, %v973
    %v1162 = vpack.c.b16 %v982, %v978
    %v1163 = vpack.c.b16 %v983, %v979
    %v1164 = vpack.c.b16 %v984, %v980
    %v1165 = vpack.c.b16 %v985, %v981
    %v1166 = vpack.c.b16 %v990, %v986
    %v1167 = vpack.c.b16 %v991, %v987
    %v1168 = vpack.c.b16 %v992, %v988
    %v1169 = vpack.c.b16 %v993, %v989
    %v1170 = vpack.c.b16 %v998, %v994
    %v1171 = vpack.c.b16 %v999, %v995
    %v1172 = vpack.c.b16 %v1000, %v996
    %v1173 = vpack.c.b16 %v1001, %v997
    %v1174 = vpack.c.b16 %v1006, %v1002
    %v1175 = vpack.c.b16 %v1007, %v1003
    %v1176 = vpack.c.b16 %v1008, %v1004
    %v1177 = vpack.c.b16 %v1009, %v1005
    %v1178 = vpack.c.b16 %v1014, %v1010
    %v1179 = vpack.c.b16 %v1015, %v1011
    %v1180 = vpack.c.b16 %v1016, %v1012
    %v1181 = vpack.c.b16 %v1017, %v1013
    %v1182 = vpack.c.b16 %v1022, %v1018
    %v1183 = vpack.c.b16 %v1023, %v1019
    %v1184 = vpack.c.b16 %v1024, %v1020
    %v1185 = vpack.c.b16 %v1025, %v1021
    %v1186 = vpack.c.b16 %v1030, %v1026
    %v1187 = vpack.c.b16 %v1031, %v1027
    %v1188 = vpack.c.b16 %v1032, %v1028
    %v1189 = vpack.c.b16 %v1033, %v1029
    %v1190 = vpack.c.b16 %v1038, %v1034
    %v1191 = vpack.c.b16 %v1039, %v1035
    %v1192 = vpack.c.b16 %v1040, %v1036
    %v1193 = vpack.c.b16 %v1041, %v1037
    %v1194 = vpack.c.b16 %v1046, %v1042
    %v1195 = vpack.c.b16 %v1047, %v1043
    %v1196 = vpack.c.b16 %v1048, %v1044
    %v1197 = vpack.c.b16 %v1049, %v1045
    %v1198 = vpack.c.b16 %v1054, %v1050
    %v1199 = vpack.c.b16 %v1055, %v1051
    %v1200 = vpack.c.b16 %v1056, %v1052
    %v1201 = vpack.c.b16 %v1057, %v1053
    %v1202 = vpack.c.b16 %v1062, %v1058
    %v1203 = vpack.c.b16 %v1063, %v1059
    %v1204 = vpack.c.b16 %v1064, %v1060
    %v1205 = vpack.c.b16 %v1065, %v1061
    %v1206 = vpack.c.b16 %v1070, %v1066
    %v1207 = vpack.c.b16 %v1071, %v1067
    %v1208 = vpack.c.b16 %v1072, %v1068
    %v1209 = vpack.c.b16 %v1073, %v1069
    %v1210 = vpack.c.b16 %v1078, %v1074
    %v1211 = vpack.c.b16 %v1079, %v1075
    %v1212 = vpack.c.b16 %v1080, %v1076
    %v1213 = vpack.c.b16 %v1081, %v1077
    %v1214 = vpack.c.b16 %v1086, %v1082
    %v1215 = vpack.c.b16 %v1087, %v1083
    %v1216 = vpack.c.b16 %v1088, %v1084
    %v1217 = vpack.c.b16 %v1089, %v1085
    %v1218 = vpack.c.b16 %v1094, %v1090
    %v1219 = vpack.c.b16 %v1095, %v1091
    %v1220 = vpack.c.b16 %v1096, %v1092
    %v1221 = vpack.c.b16 %v1097, %v1093
    %v1222 = vpack.c.b16 %v1102, %v1098
    %v1223 = vpack.c.b16 %v1103, %v1099
    %v1224 = vpack.c.b16 %v1104, %v1100
    %v1225 = vpack.c.b16 %v1105, %v1101
    %v1226 = vpack.c.b16 %v1110, %v1106
    %v1227 = vpack.c.b16 %v1111, %v1107
    %v1228 = vpack.c.b16 %v1112, %v1108
    %v1229 = vpack.c.b16 %v1113, %v1109
    %v1230 = vpack.c.b16 %v1118, %v1114
    %v1231 = vpack.c.b16 %v1119, %v1115
    %v1232 = vpack.c.b16 %v1120, %v1116
    %v1233 = vpack.c.b16 %v1121, %v1117
    %v1234 = vpack.c.b16 %v1126, %v1122
    %v1235 = vpack.c.b16 %v1127, %v1123
    %v1236 = vpack.c.b16 %v1128, %v1124
    %v1237 = vpack.c.b16 %v1129, %v1125
    %v1238 = vpack.c.b16 %v1134, %v1130
    %v1239 = vpack.c.b16 %v1135, %v1131
    %v1240 = vpack.c.b16 %v1136, %v1132
    %v1241 = vpack.c.b16 %v1137, %v1133
    %v1242 = vpack.c.b16 %v1142, %v1138
    %v1243 = vpack.c.b16 %v1143, %v1139
    %v1244 = vpack.c.b16 %v1144, %v1140
    %v1245 = vpack.c.b16 %v1145, %v1141
    %v1246 = vpack.c.b16 %v1150, %v1146
    %v1247 = vpack.c.b16 %v1151, %v1147
    %v1248 = vpack.c.b16 %v1152, %v1148
    %v1249 = vpack.c.b16 %v1153, %v1149
    %1346 = vmatprep.subr.bf16.mxu0 %v1155
    %1347 = vmatpush1.bf16.msra.mxu0 %v1154
    %1348 = vmatprep.subr.bf16.mxu0 %v1159
    %1349 = vmatpush1.bf16.msra.mxu0 %v1158
    %1350 = vmatprep.subr.bf16.mxu0 %v1163
    %1351 = vmatpush1.bf16.msra.mxu0 %v1162
    %1352 = vmatprep.subr.bf16.mxu0 %v1167
    %1353 = vmatpush1.bf16.msra.mxu0 %v1166
    %1354 = vmatprep.subr.bf16.mxu0 %v1171
    %1355 = vmatpush1.bf16.msra.mxu0 %v1170
    %1356 = vmatprep.subr.bf16.mxu0 %v1175
    %1357 = vmatpush1.bf16.msra.mxu0 %v1174
    %1358 = vmatprep.subr.bf16.mxu0 %v1179
    %1359 = vmatpush1.bf16.msra.mxu0 %v1178
    %1360 = vmatprep.subr.bf16.mxu0 %v1183
    %1361 = vmatpush1.bf16.msra.mxu0 %v1182
    %1362 = vmatprep.subr.bf16.mxu0 %v1187
    %1363 = vmatpush1.bf16.msra.mxu0 %v1186
    %1364 = vmatprep.subr.bf16.mxu0 %v1191
    %1365 = vmatpush1.bf16.msra.mxu0 %v1190
    %1366 = vmatprep.subr.bf16.mxu0 %v1195
    %1367 = vmatpush1.bf16.msra.mxu0 %v1194
    %1368 = vmatprep.subr.bf16.mxu0 %v1199
    %1369 = vmatpush1.bf16.msra.mxu0 %v1198
    %1370 = vmatprep.subr.bf16.mxu0 %v1203
    %1371 = vmatpush1.bf16.msra.mxu0 %v1202
    %1372 = vmatprep.subr.bf16.mxu0 %v1207
    %1373 = vmatpush1.bf16.msra.mxu0 %v1206
    %1374 = vmatprep.subr.bf16.mxu0 %v1211
    %1375 = vmatpush1.bf16.msra.mxu0 %v1210
    %1376 = vmatprep.subr.bf16.mxu0 %v1215
    %1377 = vmatpush1.bf16.msra.mxu0 %v1214
    %1378 = vmatprep.mubr.bf16.mxu0 %v746
    %1379 = vmatmul.mubr.bf16.gmra.mrb[0].mxu0 %v745
    %v1380 = vpop.f32.mrb[0].mxu0
    %v1381 = vadd.f32 %v849, %v1380
    %v1382 = vpop.f32.mrb[0].mxu0
    %v1383 = vadd.f32 %v853, %v1382
    %v1384 = vpop.f32.mrb[0].mxu0
    %v1385 = vadd.f32 %v849, %v1384
    %v1386 = vpop.f32.mrb[0].mxu0
    %v1387 = vadd.f32 %v853, %v1386
    %1388 = vdwg.mxu0
    %1389 = vmatprep.subr.bf16.mxu0 %v1219
    %1390 = vmatpush1.bf16.msra.mxu0 %v1218
    %1391 = vmatprep.subr.bf16.mxu0 %v1223
    %1392 = vmatpush1.bf16.msra.mxu0 %v1222
    %1393 = vmatprep.subr.bf16.mxu0 %v1227
    %1394 = vmatpush1.bf16.msra.mxu0 %v1226
    %1395 = vmatprep.subr.bf16.mxu0 %v1231
    %1396 = vmatpush1.bf16.msra.mxu0 %v1230
    %1397 = vmatprep.subr.bf16.mxu0 %v1235
    %1398 = vmatpush1.bf16.msra.mxu0 %v1234
    %1399 = vmatprep.subr.bf16.mxu0 %v1239
    %1400 = vmatpush1.bf16.msra.mxu0 %v1238
    %1401 = vmatprep.subr.bf16.mxu0 %v1243
    %1402 = vmatpush1.bf16.msra.mxu0 %v1242
    %1403 = vmatprep.subr.bf16.mxu0 %v1247
    %1404 = vmatpush1.bf16.msra.mxu0 %v1246
    %1405 = vmatprep.subr.bf16.mxu0 0
    %1406 = vmatpush1.bf16.msra.mxu0 0
    %1407 = vmatprep.subr.bf16.mxu0 0
    %1408 = vmatpush1.bf16.msra.mxu0 0
    %1409 = vmatprep.subr.bf16.mxu0 0
    %1410 = vmatpush1.bf16.msra.mxu0 0
    %1411 = vmatprep.subr.bf16.mxu0 0
    %1412 = vmatpush1.bf16.msra.mxu0 0
    %1413 = vmatprep.subr.bf16.mxu0 0
    %1414 = vmatpush1.bf16.msra.mxu0 0
    %1415 = vmatprep.subr.bf16.mxu0 0
    %1416 = vmatpush1.bf16.msra.mxu0 0
    %1417 = vmatprep.subr.bf16.mxu0 0
    %1418 = vmatpush1.bf16.msra.mxu0 0
    %1419 = vmatprep.subr.bf16.mxu0 0
    %1420 = vmatpush1.bf16.msra.mxu0 0
    %1421 = vmatprep.mubr.bf16.mxu0 0
    %1422 = vmatmul.mubr.bf16.gmra.mrb[0].mxu0 %v747
    %v1423 = vpop.f32.mrb[0].mxu0
    %v1424 = vadd.f32 %v1381, %v1423
    %v1425 = vpop.f32.mrb[0].mxu0
    %v1426 = vadd.f32 %v1383, %v1425
    %v1427 = vpop.f32.mrb[0].mxu0
    %v1428 = vadd.f32 %v1385, %v1427
    %v1429 = vpop.f32.mrb[0].mxu0
    %v1430 = vadd.f32 %v1387, %v1429
    %1431 = vdwg.mxu0
    %1432 = vmatprep.subr.bf16.mxu0 %v1157
    %1433 = vmatpush1.bf16.msra.mxu0 %v1156
    %1434 = vmatprep.subr.bf16.mxu0 %v1161
    %1435 = vmatpush1.bf16.msra.mxu0 %v1160
    %1436 = vmatprep.subr.bf16.mxu0 %v1165
    %1437 = vmatpush1.bf16.msra.mxu0 %v1164
    %1438 = vmatprep.subr.bf16.mxu0 %v1169
    %1439 = vmatpush1.bf16.msra.mxu0 %v1168
    %1440 = vmatprep.subr.bf16.mxu0 %v1173
    %1441 = vmatpush1.bf16.msra.mxu0 %v1172
    %1442 = vmatprep.subr.bf16.mxu0 %v1177
    %1443 = vmatpush1.bf16.msra.mxu0 %v1176
    %1444 = vmatprep.subr.bf16.mxu0 %v1181
    %1445 = vmatpush1.bf16.msra.mxu0 %v1180
    %1446 = vmatprep.subr.bf16.mxu0 %v1185
    %1447 = vmatpush1.bf16.msra.mxu0 %v1184
    %1448 = vmatprep.subr.bf16.mxu0 %v1189
    %1449 = vmatpush1.bf16.msra.mxu0 %v1188
    %1450 = vmatprep.subr.bf16.mxu0 %v1193
    %1451 = vmatpush1.bf16.msra.mxu0 %v1192
    %1452 = vmatprep.subr.bf16.mxu0 %v1197
    %1453 = vmatpush1.bf16.msra.mxu0 %v1196
    %1454 = vmatprep.subr.bf16.mxu0 %v1201
    %1455 = vmatpush1.bf16.msra.mxu0 %v1200
    %1456 = vmatprep.subr.bf16.mxu0 %v1205
    %1457 = vmatpush1.bf16.msra.mxu0 %v1204
    %1458 = vmatprep.subr.bf16.mxu0 %v1209
    %1459 = vmatpush1.bf16.msra.mxu0 %v1208
    %1460 = vmatprep.subr.bf16.mxu0 %v1213
    %1461 = vmatpush1.bf16.msra.mxu0 %v1212
    %1462 = vmatprep.subr.bf16.mxu0 %v1217
    %1463 = vmatpush1.bf16.msra.mxu0 %v1216
    %1464 = vmatprep.mubr.bf16.mxu0 %v746
    %1465 = vmatmul.mubr.bf16.gmra.mrb[0].mxu0 %v745
    %v1466 = vpop.f32.mrb[0].mxu0
    %v1467 = vadd.f32 %v857, %v1466
    %v1468 = vpop.f32.mrb[0].mxu0
    %v1469 = vadd.f32 %v861, %v1468
    %v1470 = vpop.f32.mrb[0].mxu0
    %v1471 = vadd.f32 %v857, %v1470
    %v1472 = vpop.f32.mrb[0].mxu0
    %v1473 = vadd.f32 %v861, %v1472
    %1474 = vdwg.mxu0
    %1475 = vmatprep.subr.bf16.mxu0 %v1221
    %1476 = vmatpush1.bf16.msra.mxu0 %v1220
    %1477 = vmatprep.subr.bf16.mxu0 %v1225
    %1478 = vmatpush1.bf16.msra.mxu0 %v1224
    %1479 = vmatprep.subr.bf16.mxu0 %v1229
    %1480 = vmatpush1.bf16.msra.mxu0 %v1228
    %1481 = vmatprep.subr.bf16.mxu0 %v1233
    %1482 = vmatpush1.bf16.msra.mxu0 %v1232
    %1483 = vmatprep.subr.bf16.mxu0 %v1237
    %1484 = vmatpush1.bf16.msra.mxu0 %v1236
    %1485 = vmatprep.subr.bf16.mxu0 %v1241
    %1486 = vmatpush1.bf16.msra.mxu0 %v1240
    %1487 = vmatprep.subr.bf16.mxu0 %v1245
    %1488 = vmatpush1.bf16.msra.mxu0 %v1244
    %1489 = vmatprep.subr.bf16.mxu0 %v1249
    %1490 = vmatpush1.bf16.msra.mxu0 %v1248
    %1491 = vmatprep.subr.bf16.mxu0 0
    %1492 = vmatpush1.bf16.msra.mxu0 0
    %1493 = vmatprep.subr.bf16.mxu0 0
    %1494 = vmatpush1.bf16.msra.mxu0 0
    %1495 = vmatprep.subr.bf16.mxu0 0
    %1496 = vmatpush1.bf16.msra.mxu0 0
    %1497 = vmatprep.subr.bf16.mxu0 0
    %1498 = vmatpush1.bf16.msra.mxu0 0
    %1499 = vmatprep.subr.bf16.mxu0 0
    %1500 = vmatpush1.bf16.msra.mxu0 0
    %1501 = vmatprep.subr.bf16.mxu0 0
    %1502 = vmatpush1.bf16.msra.mxu0 0
    %1503 = vmatprep.subr.bf16.mxu0 0
    %1504 = vmatpush1.bf16.msra.mxu0 0
    %1505 = vmatprep.subr.bf16.mxu0 0
    %1506 = vmatpush1.bf16.msra.mxu0 0
    %1507 = vmatprep.mubr.bf16.mxu0 0
    %1508 = vmatmul.mubr.bf16.gmra.mrb[0].mxu0 %v747
    %v1509 = vpop.f32.mrb[0].mxu0
    %v1510 = vadd.f32 %v1467, %v1509
    %v1511 = vpop.f32.mrb[0].mxu0
    %v1512 = vadd.f32 %v1469, %v1511
    %v1513 = vpop.f32.mrb[0].mxu0
    %v1514 = vadd.f32 %v1471, %v1513
    %v1515 = vpop.f32.mrb[0].mxu0
    %v1516 = vadd.f32 %v1473, %v1515
    %1517 = vdwg.mxu0
    %v1518 = vmax.f32 %v1424, 0.0
    %v1519 = vmax.f32 %v1426, 0.0
    %v1520 = vmax.f32 %v1510, 0.0
    %v1521 = vmax.f32 %v1512, 0.0
    %v1522 = vmax.f32 %v1428, 0.0
    %v1523 = vmax.f32 %v1430, 0.0
    %v1524 = vmax.f32 %v1514, 0.0
    %v1525 = vmax.f32 %v1516, 0.0
    %v1526 = vpack.c.bf16 %v1522, %v1518
    %v1527 = vpack.c.bf16 %v1523, %v1519
    %v1528 = vpack.c.bf16 %v1524, %v1520
    %v1529 = vpack.c.bf16 %v1525, %v1521
    %v1530 = vld [vmem:[#allocation7] sm:$0xff]
    %v1531 = vld [vmem:[#allocation7 + $0x8] sm:$0xff]
    %v1532 = vld [vmem:[#allocation7 + $0x10] sm:$0xff]
    %v1533 = vld [vmem:[#allocation7 + $0x18] sm:$0xff]
    %v1534 = vld [vmem:[#allocation7 + $0x20] sm:$0xff]
    %v1535 = vld [vmem:[#allocation7 + $0x28] sm:$0xff]
    %v1536 = vld [vmem:[#allocation7 + $0x30] sm:$0xff]
    %v1537 = vld [vmem:[#allocation7 + $0x38] sm:$0xff]
    %v1538 = vld [vmem:[#allocation7 + $0x40] sm:$0xff]
    %v1539 = vld [vmem:[#allocation7 + $0x48] sm:$0xff]
    %v1540 = vld [vmem:[#allocation7 + $0x50] sm:$0xff]
    %v1541 = vld [vmem:[#allocation7 + $0x58] sm:$0xff]
    %v1542 = vld [vmem:[#allocation7 + $0x60] sm:$0xff]
    %v1543 = vld [vmem:[#allocation7 + $0x68] sm:$0xff]
    %v1544 = vld [vmem:[#allocation7 + $0x70] sm:$0xff]
    %v1545 = vld [vmem:[#allocation7 + $0x78] sm:$0xff]
    %v1546 = vld [vmem:[#allocation7 + $0x80] sm:$0xff]
    %v1547 = vld [vmem:[#allocation7 + $0x88] sm:$0xff]
    %v1548 = vld [vmem:[#allocation7 + $0x90] sm:$0xff]
    %v1549 = vld [vmem:[#allocation7 + $0x98] sm:$0xff]
    %v1550 = vld [vmem:[#allocation7 + $0xa0] sm:$0xff]
    %v1551 = vld [vmem:[#allocation7 + $0xa8] sm:$0xff]
    %v1552 = vld [vmem:[#allocation7 + $0xb0] sm:$0xff]
    %v1553 = vld [vmem:[#allocation7 + $0xb8] sm:$0xff]
    %v1554 = vld [vmem:[#allocation7 + $0xc0] sm:$0xff]
    %v1555 = vld [vmem:[#allocation7 + $0xc8] sm:$0xff]
    %v1556 = vld [vmem:[#allocation7 + $0xd0] sm:$0xff]
    %v1557 = vld [vmem:[#allocation7 + $0xd8] sm:$0xff]
    %v1558 = vld [vmem:[#allocation7 + $0xe0] sm:$0xff]
    %v1559 = vld [vmem:[#allocation7 + $0xe8] sm:$0xff]
    %v1560 = vld [vmem:[#allocation7 + $0xf0] sm:$0xff]
    %v1561 = vld [vmem:[#allocation7 + $0xf8] sm:$0xff]
    %v1562 = vld [vmem:[#allocation7 + $0x100] sm:$0xff]
    %v1563 = vld [vmem:[#allocation7 + $0x108] sm:$0xff]
    %v1564 = vld [vmem:[#allocation7 + $0x110] sm:$0xff]
    %v1565 = vld [vmem:[#allocation7 + $0x118] sm:$0xff]
    %v1566 = vld [vmem:[#allocation7 + $0x120] sm:$0xff]
    %v1567 = vld [vmem:[#allocation7 + $0x128] sm:$0xff]
    %v1568 = vld [vmem:[#allocation7 + $0x130] sm:$0xff]
    %v1569 = vld [vmem:[#allocation7 + $0x138] sm:$0xff]
    %v1570 = vld [vmem:[#allocation7 + $0x140] sm:$0xff]
    %v1571 = vld [vmem:[#allocation7 + $0x148] sm:$0xff]
    %v1572 = vld [vmem:[#allocation7 + $0x150] sm:$0xff]
    %v1573 = vld [vmem:[#allocation7 + $0x158] sm:$0xff]
    %v1574 = vld [vmem:[#allocation7 + $0x160] sm:$0xff]
    %v1575 = vld [vmem:[#allocation7 + $0x168] sm:$0xff]
    %v1576 = vld [vmem:[#allocation7 + $0x170] sm:$0xff]
    %v1577 = vld [vmem:[#allocation7 + $0x178] sm:$0xff]
    %v1578 = vld [vmem:[#allocation7 + $0x180] sm:$0xff]
    %v1579 = vld [vmem:[#allocation7 + $0x188] sm:$0xff]
    %v1580 = vld [vmem:[#allocation7 + $0x190] sm:$0xff]
    %v1581 = vld [vmem:[#allocation7 + $0x198] sm:$0xff]
    %v1582 = vld [vmem:[#allocation7 + $0x1a0] sm:$0xff]
    %v1583 = vld [vmem:[#allocation7 + $0x1a8] sm:$0xff]
    %v1584 = vld [vmem:[#allocation7 + $0x1b0] sm:$0xff]
    %v1585 = vld [vmem:[#allocation7 + $0x1b8] sm:$0xff]
    %v1586 = vld [vmem:[#allocation7 + $0x1c0] sm:$0xff]
    %v1587 = vld [vmem:[#allocation7 + $0x1c8] sm:$0xff]
    %v1588 = vld [vmem:[#allocation7 + $0x1d0] sm:$0xff]
    %v1589 = vld [vmem:[#allocation7 + $0x1d8] sm:$0xff]
    %v1590 = vld [vmem:[#allocation7 + $0x1e0] sm:$0xff]
    %v1591 = vld [vmem:[#allocation7 + $0x1e8] sm:$0xff]
    %v1592 = vld [vmem:[#allocation7 + $0x1f0] sm:$0xff]
    %v1593 = vld [vmem:[#allocation7 + $0x1f8] sm:$0xff]
    %v1594 = vld [vmem:[#allocation7 + $0x200] sm:$0xff]
    %v1595 = vld [vmem:[#allocation7 + $0x208] sm:$0xff]
    %v1596 = vld [vmem:[#allocation7 + $0x210] sm:$0xff]
    %v1597 = vld [vmem:[#allocation7 + $0x218] sm:$0xff]
    %v1598 = vld [vmem:[#allocation7 + $0x220] sm:$0xff]
    %v1599 = vld [vmem:[#allocation7 + $0x228] sm:$0xff]
    %v1600 = vld [vmem:[#allocation7 + $0x230] sm:$0xff]
    %v1601 = vld [vmem:[#allocation7 + $0x238] sm:$0xff]
    %v1602 = vld [vmem:[#allocation7 + $0x240] sm:$0xff]
    %v1603 = vld [vmem:[#allocation7 + $0x248] sm:$0xff]
    %v1604 = vld [vmem:[#allocation7 + $0x250] sm:$0xff]
    %v1605 = vld [vmem:[#allocation7 + $0x258] sm:$0xff]
    %v1606 = vld [vmem:[#allocation7 + $0x260] sm:$0xff]
    %v1607 = vld [vmem:[#allocation7 + $0x268] sm:$0xff]
    %v1608 = vld [vmem:[#allocation7 + $0x270] sm:$0xff]
    %v1609 = vld [vmem:[#allocation7 + $0x278] sm:$0xff]
    %v1610 = vld [vmem:[#allocation7 + $0x280] sm:$0xff]
    %v1611 = vld [vmem:[#allocation7 + $0x288] sm:$0xff]
    %v1612 = vld [vmem:[#allocation7 + $0x290] sm:$0xff]
    %v1613 = vld [vmem:[#allocation7 + $0x298] sm:$0xff]
    %v1614 = vld [vmem:[#allocation7 + $0x2a0] sm:$0xff]
    %v1615 = vld [vmem:[#allocation7 + $0x2a8] sm:$0xff]
    %v1616 = vld [vmem:[#allocation7 + $0x2b0] sm:$0xff]
    %v1617 = vld [vmem:[#allocation7 + $0x2b8] sm:$0xff]
    %v1618 = vld [vmem:[#allocation7 + $0x2c0] sm:$0xff]
    %v1619 = vld [vmem:[#allocation7 + $0x2c8] sm:$0xff]
    %v1620 = vld [vmem:[#allocation7 + $0x2d0] sm:$0xff]
    %v1621 = vld [vmem:[#allocation7 + $0x2d8] sm:$0xff]
    %v1622 = vld [vmem:[#allocation7 + $0x2e0] sm:$0xff]
    %v1623 = vld [vmem:[#allocation7 + $0x2e8] sm:$0xff]
    %v1624 = vld [vmem:[#allocation7 + $0x2f0] sm:$0xff]
    %v1625 = vld [vmem:[#allocation7 + $0x2f8] sm:$0xff]
    %v1626 = vld [vmem:[#allocation7 + $0x300] sm:$0xff]
    %v1627 = vld [vmem:[#allocation7 + $0x308] sm:$0xff]
    %v1628 = vld [vmem:[#allocation7 + $0x310] sm:$0xff]
    %v1629 = vld [vmem:[#allocation7 + $0x318] sm:$0xff]
    %v1630 = vld [vmem:[#allocation7 + $0x320] sm:$0xff]
    %v1631 = vld [vmem:[#allocation7 + $0x328] sm:$0xff]
    %v1632 = vld [vmem:[#allocation7 + $0x330] sm:$0xff]
    %v1633 = vld [vmem:[#allocation7 + $0x338] sm:$0xff]
    %v1634 = vld [vmem:[#allocation7 + $0x340] sm:$0xff]
    %v1635 = vld [vmem:[#allocation7 + $0x348] sm:$0xff]
    %v1636 = vld [vmem:[#allocation7 + $0x350] sm:$0xff]
    %v1637 = vld [vmem:[#allocation7 + $0x358] sm:$0xff]
    %v1638 = vld [vmem:[#allocation7 + $0x360] sm:$0xff]
    %v1639 = vld [vmem:[#allocation7 + $0x368] sm:$0xff]
    %v1640 = vld [vmem:[#allocation7 + $0x370] sm:$0xff]
    %v1641 = vld [vmem:[#allocation7 + $0x378] sm:$0xff]
    %v1642 = vld [vmem:[#allocation7 + $0x380] sm:$0xff]
    %v1643 = vld [vmem:[#allocation7 + $0x388] sm:$0xff]
    %v1644 = vld [vmem:[#allocation7 + $0x390] sm:$0xff]
    %v1645 = vld [vmem:[#allocation7 + $0x398] sm:$0xff]
    %v1646 = vld [vmem:[#allocation7 + $0x3a0] sm:$0xff]
    %v1647 = vld [vmem:[#allocation7 + $0x3a8] sm:$0xff]
    %v1648 = vld [vmem:[#allocation7 + $0x3b0] sm:$0xff]
    %v1649 = vld [vmem:[#allocation7 + $0x3b8] sm:$0xff]
    %v1650 = vld [vmem:[#allocation7 + $0x3c0] sm:$0xff]
    %v1651 = vld [vmem:[#allocation7 + $0x3c8] sm:$0xff]
    %v1652 = vld [vmem:[#allocation7 + $0x3d0] sm:$0xff]
    %v1653 = vld [vmem:[#allocation7 + $0x3d8] sm:$0xff]
    %v1654 = vld [vmem:[#allocation7 + $0x3e0] sm:$0xff]
    %v1655 = vld [vmem:[#allocation7 + $0x3e8] sm:$0xff]
    %v1656 = vld [vmem:[#allocation7 + $0x3f0] sm:$0xff]
    %v1657 = vld [vmem:[#allocation7 + $0x3f8] sm:$0xff]
    %v1658 = vld [vmem:[#allocation7 + $0x400] sm:$0xff]
    %v1659 = vld [vmem:[#allocation7 + $0x408] sm:$0xff]
    %v1660 = vld [vmem:[#allocation7 + $0x410] sm:$0xff]
    %v1661 = vld [vmem:[#allocation7 + $0x418] sm:$0xff]
    %v1662 = vld [vmem:[#allocation7 + $0x420] sm:$0xff]
    %v1663 = vld [vmem:[#allocation7 + $0x428] sm:$0xff]
    %v1664 = vld [vmem:[#allocation7 + $0x430] sm:$0xff]
    %v1665 = vld [vmem:[#allocation7 + $0x438] sm:$0xff]
    %v1666 = vld [vmem:[#allocation7 + $0x440] sm:$0xff]
    %v1667 = vld [vmem:[#allocation7 + $0x448] sm:$0xff]
    %v1668 = vld [vmem:[#allocation7 + $0x450] sm:$0xff]
    %v1669 = vld [vmem:[#allocation7 + $0x458] sm:$0xff]
    %v1670 = vld [vmem:[#allocation7 + $0x460] sm:$0xff]
    %v1671 = vld [vmem:[#allocation7 + $0x468] sm:$0xff]
    %v1672 = vld [vmem:[#allocation7 + $0x470] sm:$0xff]
    %v1673 = vld [vmem:[#allocation7 + $0x478] sm:$0xff]
    %v1674 = vld [vmem:[#allocation7 + $0x480] sm:$0xff]
    %v1675 = vld [vmem:[#allocation7 + $0x488] sm:$0xff]
    %v1676 = vld [vmem:[#allocation7 + $0x490] sm:$0xff]
    %v1677 = vld [vmem:[#allocation7 + $0x498] sm:$0xff]
    %v1678 = vld [vmem:[#allocation7 + $0x4a0] sm:$0xff]
    %v1679 = vld [vmem:[#allocation7 + $0x4a8] sm:$0xff]
    %v1680 = vld [vmem:[#allocation7 + $0x4b0] sm:$0xff]
    %v1681 = vld [vmem:[#allocation7 + $0x4b8] sm:$0xff]
    %v1682 = vld [vmem:[#allocation7 + $0x4c0] sm:$0xff]
    %v1683 = vld [vmem:[#allocation7 + $0x4c8] sm:$0xff]
    %v1684 = vld [vmem:[#allocation7 + $0x4d0] sm:$0xff]
    %v1685 = vld [vmem:[#allocation7 + $0x4d8] sm:$0xff]
    %v1686 = vld [vmem:[#allocation7 + $0x4e0] sm:$0xff]
    %v1687 = vld [vmem:[#allocation7 + $0x4e8] sm:$0xff]
    %v1688 = vld [vmem:[#allocation7 + $0x4f0] sm:$0xff]
    %v1689 = vld [vmem:[#allocation7 + $0x4f8] sm:$0xff]
    %v1690 = vld [vmem:[#allocation7 + $0x500] sm:$0xff]
    %v1691 = vld [vmem:[#allocation7 + $0x508] sm:$0xff]
    %v1692 = vld [vmem:[#allocation7 + $0x510] sm:$0xff]
    %v1693 = vld [vmem:[#allocation7 + $0x518] sm:$0xff]
    %v1694 = vld [vmem:[#allocation7 + $0x520] sm:$0xff]
    %v1695 = vld [vmem:[#allocation7 + $0x528] sm:$0xff]
    %v1696 = vld [vmem:[#allocation7 + $0x530] sm:$0xff]
    %v1697 = vld [vmem:[#allocation7 + $0x538] sm:$0xff]
    %v1698 = vld [vmem:[#allocation7 + $0x540] sm:$0xff]
    %v1699 = vld [vmem:[#allocation7 + $0x548] sm:$0xff]
    %v1700 = vld [vmem:[#allocation7 + $0x550] sm:$0xff]
    %v1701 = vld [vmem:[#allocation7 + $0x558] sm:$0xff]
    %v1702 = vld [vmem:[#allocation7 + $0x560] sm:$0xff]
    %v1703 = vld [vmem:[#allocation7 + $0x568] sm:$0xff]
    %v1704 = vld [vmem:[#allocation7 + $0x570] sm:$0xff]
    %v1705 = vld [vmem:[#allocation7 + $0x578] sm:$0xff]
    %v1706 = vld [vmem:[#allocation7 + $0x580] sm:$0xff]
    %v1707 = vld [vmem:[#allocation7 + $0x588] sm:$0xff]
    %v1708 = vld [vmem:[#allocation7 + $0x590] sm:$0xff]
    %v1709 = vld [vmem:[#allocation7 + $0x598] sm:$0xff]
    %v1710 = vld [vmem:[#allocation7 + $0x5a0] sm:$0xff]
    %v1711 = vld [vmem:[#allocation7 + $0x5a8] sm:$0xff]
    %v1712 = vld [vmem:[#allocation7 + $0x5b0] sm:$0xff]
    %v1713 = vld [vmem:[#allocation7 + $0x5b8] sm:$0xff]
    %v1714 = vld [vmem:[#allocation7 + $0x5c0] sm:$0xff]
    %v1715 = vld [vmem:[#allocation7 + $0x5c8] sm:$0xff]
    %v1716 = vld [vmem:[#allocation7 + $0x5d0] sm:$0xff]
    %v1717 = vld [vmem:[#allocation7 + $0x5d8] sm:$0xff]
    %v1718 = vld [vmem:[#allocation7 + $0x5e0] sm:$0xff]
    %v1719 = vld [vmem:[#allocation7 + $0x5e8] sm:$0xff]
    %v1720 = vld [vmem:[#allocation7 + $0x5f0] sm:$0xff]
    %v1721 = vld [vmem:[#allocation7 + $0x5f8] sm:$0xff]
    %v1722 = vld [vmem:[#allocation7 + $0x600] sm:$0xff]
    %v1723 = vld [vmem:[#allocation7 + $0x608] sm:$0xff]
    %v1724 = vld [vmem:[#allocation7 + $0x610] sm:$0xff]
    %v1725 = vld [vmem:[#allocation7 + $0x618] sm:$0xff]
    %v1726 = vld [vmem:[#allocation7 + $0x620] sm:$0xff]
    %v1727 = vld [vmem:[#allocation7 + $0x628] sm:$0xff]
    %v1728 = vld [vmem:[#allocation7 + $0x630] sm:$0xff]
    %v1729 = vld [vmem:[#allocation7 + $0x638] sm:$0xff]
    %v1730 = vld [vmem:[#allocation7 + $0x640] sm:$0xff]
    %v1731 = vld [vmem:[#allocation7 + $0x648] sm:$0xff]
    %v1732 = vld [vmem:[#allocation7 + $0x650] sm:$0xff]
    %v1733 = vld [vmem:[#allocation7 + $0x658] sm:$0xff]
    %v1734 = vld [vmem:[#allocation7 + $0x660] sm:$0xff]
    %v1735 = vld [vmem:[#allocation7 + $0x668] sm:$0xff]
    %v1736 = vld [vmem:[#allocation7 + $0x670] sm:$0xff]
    %v1737 = vld [vmem:[#allocation7 + $0x678] sm:$0xff]
    %v1738 = vld [vmem:[#allocation7 + $0x680] sm:$0xff]
    %v1739 = vld [vmem:[#allocation7 + $0x688] sm:$0xff]
    %v1740 = vld [vmem:[#allocation7 + $0x690] sm:$0xff]
    %v1741 = vld [vmem:[#allocation7 + $0x698] sm:$0xff]
    %v1742 = vld [vmem:[#allocation7 + $0x6a0] sm:$0xff]
    %v1743 = vld [vmem:[#allocation7 + $0x6a8] sm:$0xff]
    %v1744 = vld [vmem:[#allocation7 + $0x6b0] sm:$0xff]
    %v1745 = vld [vmem:[#allocation7 + $0x6b8] sm:$0xff]
    %v1746 = vld [vmem:[#allocation7 + $0x6c0] sm:$0xff]
    %v1747 = vld [vmem:[#allocation7 + $0x6c8] sm:$0xff]
    %v1748 = vld [vmem:[#allocation7 + $0x6d0] sm:$0xff]
    %v1749 = vld [vmem:[#allocation7 + $0x6d8] sm:$0xff]
    %v1750 = vld [vmem:[#allocation7 + $0x6e0] sm:$0xff]
    %v1751 = vld [vmem:[#allocation7 + $0x6e8] sm:$0xff]
    %v1752 = vld [vmem:[#allocation7 + $0x6f0] sm:$0xff]
    %v1753 = vld [vmem:[#allocation7 + $0x6f8] sm:$0xff]
    %v1754 = vld [vmem:[#allocation7 + $0x700] sm:$0xff]
    %v1755 = vld [vmem:[#allocation7 + $0x708] sm:$0xff]
    %v1756 = vld [vmem:[#allocation7 + $0x710] sm:$0xff]
    %v1757 = vld [vmem:[#allocation7 + $0x718] sm:$0xff]
    %v1758 = vld [vmem:[#allocation7 + $0x720] sm:$0xff]
    %v1759 = vld [vmem:[#allocation7 + $0x728] sm:$0xff]
    %v1760 = vld [vmem:[#allocation7 + $0x730] sm:$0xff]
    %v1761 = vld [vmem:[#allocation7 + $0x738] sm:$0xff]
    %v1762 = vld [vmem:[#allocation7 + $0x740] sm:$0xff]
    %v1763 = vld [vmem:[#allocation7 + $0x748] sm:$0xff]
    %v1764 = vld [vmem:[#allocation7 + $0x750] sm:$0xff]
    %v1765 = vld [vmem:[#allocation7 + $0x758] sm:$0xff]
    %v1766 = vld [vmem:[#allocation7 + $0x760] sm:$0xff]
    %v1767 = vld [vmem:[#allocation7 + $0x768] sm:$0xff]
    %v1768 = vld [vmem:[#allocation7 + $0x770] sm:$0xff]
    %v1769 = vld [vmem:[#allocation7 + $0x778] sm:$0xff]
    %v1770 = vld [vmem:[#allocation7 + $0x780] sm:$0xff]
    %v1771 = vld [vmem:[#allocation7 + $0x788] sm:$0xff]
    %v1772 = vld [vmem:[#allocation7 + $0x790] sm:$0xff]
    %v1773 = vld [vmem:[#allocation7 + $0x798] sm:$0xff]
    %v1774 = vld [vmem:[#allocation7 + $0x7a0] sm:$0xff]
    %v1775 = vld [vmem:[#allocation7 + $0x7a8] sm:$0xff]
    %v1776 = vld [vmem:[#allocation7 + $0x7b0] sm:$0xff]
    %v1777 = vld [vmem:[#allocation7 + $0x7b8] sm:$0xff]
    %v1778 = vld [vmem:[#allocation7 + $0x7c0] sm:$0xff]
    %v1779 = vld [vmem:[#allocation7 + $0x7c8] sm:$0xff]
    %v1780 = vld [vmem:[#allocation7 + $0x7d0] sm:$0xff]
    %v1781 = vld [vmem:[#allocation7 + $0x7d8] sm:$0xff]
    %v1782 = vld [vmem:[#allocation7 + $0x7e0] sm:$0xff]
    %v1783 = vld [vmem:[#allocation7 + $0x7e8] sm:$0xff]
    %v1784 = vld [vmem:[#allocation7 + $0x7f0] sm:$0xff]
    %v1785 = vld [vmem:[#allocation7 + $0x7f8] sm:$0xff]
    %v1786 = vld [vmem:[%s10] sm:$0xff]
    %v1788 = vlaneseq
    %v1789 = vshrl.u32 %v1788, 7
    %v1790 = vsub.s32 0, %v1789
    %v1791 = vrot.slane %v1786, %v1790
    %v1792 = vlaneseq
    %v1793 = vshrl.u32 %v1792, 7
    %v1794 = vsub.s32 1, %v1793
    %v1795 = vrot.slane %v1786, %v1794
    %v1796 = vlaneseq
    %v1797 = vshrl.u32 %v1796, 7
    %v1798 = vsub.s32 2, %v1797
    %v1799 = vrot.slane %v1786, %v1798
    %v1800 = vlaneseq
    %v1801 = vshrl.u32 %v1800, 7
    %v1802 = vsub.s32 3, %v1801
    %v1803 = vrot.slane %v1786, %v1802
    %v1804 = vlaneseq
    %v1805 = vshrl.u32 %v1804, 7
    %v1806 = vsub.s32 4, %v1805
    %v1807 = vrot.slane %v1786, %v1806
    %v1808 = vlaneseq
    %v1809 = vshrl.u32 %v1808, 7
    %v1810 = vsub.s32 5, %v1809
    %v1811 = vrot.slane %v1786, %v1810
    %v1812 = vlaneseq
    %v1813 = vshrl.u32 %v1812, 7
    %v1814 = vsub.s32 6, %v1813
    %v1815 = vrot.slane %v1786, %v1814
    %v1816 = vlaneseq
    %v1817 = vshrl.u32 %v1816, 7
    %v1818 = vsub.s32 7, %v1817
    %v1819 = vrot.slane %v1786, %v1818
    %v2084 = vunpack.c.l.b16 %v1530
    %v2085 = vunpack.c.h.b16 %v1530
    %v2086 = vunpack.c.l.b16 %v1531
    %v2087 = vunpack.c.h.b16 %v1531
    %v2088 = vunpack.c.l.b16 %v1532
    %v2089 = vunpack.c.h.b16 %v1532
    %v2090 = vunpack.c.l.b16 %v1533
    %v2091 = vunpack.c.h.b16 %v1533
    %v2092 = vunpack.c.l.b16 %v1534
    %v2093 = vunpack.c.h.b16 %v1534
    %v2094 = vunpack.c.l.b16 %v1535
    %v2095 = vunpack.c.h.b16 %v1535
    %v2096 = vunpack.c.l.b16 %v1536
    %v2097 = vunpack.c.h.b16 %v1536
    %v2098 = vunpack.c.l.b16 %v1537
    %v2099 = vunpack.c.h.b16 %v1537
    %v2100 = vunpack.c.l.b16 %v1538
    %v2101 = vunpack.c.h.b16 %v1538
    %v2102 = vunpack.c.l.b16 %v1539
    %v2103 = vunpack.c.h.b16 %v1539
    %v2104 = vunpack.c.l.b16 %v1540
    %v2105 = vunpack.c.h.b16 %v1540
    %v2106 = vunpack.c.l.b16 %v1541
    %v2107 = vunpack.c.h.b16 %v1541
    %v2108 = vunpack.c.l.b16 %v1542
    %v2109 = vunpack.c.h.b16 %v1542
    %v2110 = vunpack.c.l.b16 %v1543
    %v2111 = vunpack.c.h.b16 %v1543
    %v2112 = vunpack.c.l.b16 %v1544
    %v2113 = vunpack.c.h.b16 %v1544
    %v2114 = vunpack.c.l.b16 %v1545
    %v2115 = vunpack.c.h.b16 %v1545
    %v2116 = vunpack.c.l.b16 %v1546
    %v2117 = vunpack.c.h.b16 %v1546
    %v2118 = vunpack.c.l.b16 %v1547
    %v2119 = vunpack.c.h.b16 %v1547
    %v2120 = vunpack.c.l.b16 %v1548
    %v2121 = vunpack.c.h.b16 %v1548
    %v2122 = vunpack.c.l.b16 %v1549
    %v2123 = vunpack.c.h.b16 %v1549
    %v2124 = vunpack.c.l.b16 %v1550
    %v2125 = vunpack.c.h.b16 %v1550
    %v2126 = vunpack.c.l.b16 %v1551
    %v2127 = vunpack.c.h.b16 %v1551
    %v2128 = vunpack.c.l.b16 %v1552
    %v2129 = vunpack.c.h.b16 %v1552
    %v2130 = vunpack.c.l.b16 %v1553
    %v2131 = vunpack.c.h.b16 %v1553
    %v2132 = vunpack.c.l.b16 %v1554
    %v2133 = vunpack.c.h.b16 %v1554
    %v2134 = vunpack.c.l.b16 %v1555
    %v2135 = vunpack.c.h.b16 %v1555
    %v2136 = vunpack.c.l.b16 %v1556
    %v2137 = vunpack.c.h.b16 %v1556
    %v2138 = vunpack.c.l.b16 %v1557
    %v2139 = vunpack.c.h.b16 %v1557
    %v2140 = vunpack.c.l.b16 %v1558
    %v2141 = vunpack.c.h.b16 %v1558
    %v2142 = vunpack.c.l.b16 %v1559
    %v2143 = vunpack.c.h.b16 %v1559
    %v2144 = vunpack.c.l.b16 %v1560
    %v2145 = vunpack.c.h.b16 %v1560
    %v2146 = vunpack.c.l.b16 %v1561
    %v2147 = vunpack.c.h.b16 %v1561
    %v2148 = vunpack.c.l.b16 %v1562
    %v2149 = vunpack.c.h.b16 %v1562
    %v2150 = vunpack.c.l.b16 %v1563
    %v2151 = vunpack.c.h.b16 %v1563
    %v2152 = vunpack.c.l.b16 %v1564
    %v2153 = vunpack.c.h.b16 %v1564
    %v2154 = vunpack.c.l.b16 %v1565
    %v2155 = vunpack.c.h.b16 %v1565
    %v2156 = vunpack.c.l.b16 %v1566
    %v2157 = vunpack.c.h.b16 %v1566
    %v2158 = vunpack.c.l.b16 %v1567
    %v2159 = vunpack.c.h.b16 %v1567
    %v2160 = vunpack.c.l.b16 %v1568
    %v2161 = vunpack.c.h.b16 %v1568
    %v2162 = vunpack.c.l.b16 %v1569
    %v2163 = vunpack.c.h.b16 %v1569
    %v2164 = vunpack.c.l.b16 %v1570
    %v2165 = vunpack.c.h.b16 %v1570
    %v2166 = vunpack.c.l.b16 %v1571
    %v2167 = vunpack.c.h.b16 %v1571
    %v2168 = vunpack.c.l.b16 %v1572
    %v2169 = vunpack.c.h.b16 %v1572
    %v2170 = vunpack.c.l.b16 %v1573
    %v2171 = vunpack.c.h.b16 %v1573
    %v2172 = vunpack.c.l.b16 %v1574
    %v2173 = vunpack.c.h.b16 %v1574
    %v2174 = vunpack.c.l.b16 %v1575
    %v2175 = vunpack.c.h.b16 %v1575
    %v2176 = vunpack.c.l.b16 %v1576
    %v2177 = vunpack.c.h.b16 %v1576
    %v2178 = vunpack.c.l.b16 %v1577
    %v2179 = vunpack.c.h.b16 %v1577
    %v2180 = vunpack.c.l.b16 %v1578
    %v2181 = vunpack.c.h.b16 %v1578
    %v2182 = vunpack.c.l.b16 %v1579
    %v2183 = vunpack.c.h.b16 %v1579
    %v2184 = vunpack.c.l.b16 %v1580
    %v2185 = vunpack.c.h.b16 %v1580
    %v2186 = vunpack.c.l.b16 %v1581
    %v2187 = vunpack.c.h.b16 %v1581
    %v2188 = vunpack.c.l.b16 %v1582
    %v2189 = vunpack.c.h.b16 %v1582
    %v2190 = vunpack.c.l.b16 %v1583
    %v2191 = vunpack.c.h.b16 %v1583
    %v2192 = vunpack.c.l.b16 %v1584
    %v2193 = vunpack.c.h.b16 %v1584
    %v2194 = vunpack.c.l.b16 %v1585
    %v2195 = vunpack.c.h.b16 %v1585
    %v2196 = vunpack.c.l.b16 %v1586
    %v2197 = vunpack.c.h.b16 %v1586
    %v2198 = vunpack.c.l.b16 %v1587
    %v2199 = vunpack.c.h.b16 %v1587
    %v2200 = vunpack.c.l.b16 %v1588
    %v2201 = vunpack.c.h.b16 %v1588
    %v2202 = vunpack.c.l.b16 %v1589
    %v2203 = vunpack.c.h.b16 %v1589
    %v2204 = vunpack.c.l.b16 %v1590
    %v2205 = vunpack.c.h.b16 %v1590
    %v2206 = vunpack.c.l.b16 %v1591
    %v2207 = vunpack.c.h.b16 %v1591
    %v2208 = vunpack.c.l.b16 %v1592
    %v2209 = vunpack.c.h.b16 %v1592
    %v2210 = vunpack.c.l.b16 %v1593
    %v2211 = vunpack.c.h.b16 %v1593
    %v2212 = vunpack.c.l.b16 %v1594
    %v2213 = vunpack.c.h.b16 %v1594
    %v2214 = vunpack.c.l.b16 %v1595
    %v2215 = vunpack.c.h.b16 %v1595
    %v2216 = vunpack.c.l.b16 %v1596
    %v2217 = vunpack.c.h.b16 %v1596
    %v2218 = vunpack.c.l.b16 %v1597
    %v2219 = vunpack.c.h.b16 %v1597
    %v2220 = vunpack.c.l.b16 %v1598
    %v2221 = vunpack.c.h.b16 %v1598
    %v2222 = vunpack.c.l.b16 %v1599
    %v2223 = vunpack.c.h.b16 %v1599
    %v2224 = vunpack.c.l.b16 %v1600
    %v2225 = vunpack.c.h.b16 %v1600
    %v2226 = vunpack.c.l.b16 %v1601
    %v2227 = vunpack.c.h.b16 %v1601
    %v2228 = vunpack.c.l.b16 %v1602
    %v2229 = vunpack.c.h.b16 %v1602
    %v2230 = vunpack.c.l.b16 %v1603
    %v2231 = vunpack.c.h.b16 %v1603
    %v2232 = vunpack.c.l.b16 %v1604
    %v2233 = vunpack.c.h.b16 %v1604
    %v2234 = vunpack.c.l.b16 %v1605
    %v2235 = vunpack.c.h.b16 %v1605
    %v2236 = vunpack.c.l.b16 %v1606
    %v2237 = vunpack.c.h.b16 %v1606
    %v2238 = vunpack.c.l.b16 %v1607
    %v2239 = vunpack.c.h.b16 %v1607
    %v2240 = vunpack.c.l.b16 %v1608
    %v2241 = vunpack.c.h.b16 %v1608
    %v2242 = vunpack.c.l.b16 %v1609
    %v2243 = vunpack.c.h.b16 %v1609
    %v2244 = vunpack.c.l.b16 %v1610
    %v2245 = vunpack.c.h.b16 %v1610
    %v2246 = vunpack.c.l.b16 %v1611
    %v2247 = vunpack.c.h.b16 %v1611
    %v2248 = vunpack.c.l.b16 %v1612
    %v2249 = vunpack.c.h.b16 %v1612
    %v2250 = vunpack.c.l.b16 %v1613
    %v2251 = vunpack.c.h.b16 %v1613
    %v2252 = vunpack.c.l.b16 %v1614
    %v2253 = vunpack.c.h.b16 %v1614
    %v2254 = vunpack.c.l.b16 %v1615
    %v2255 = vunpack.c.h.b16 %v1615
    %v2256 = vunpack.c.l.b16 %v1616
    %v2257 = vunpack.c.h.b16 %v1616
    %v2258 = vunpack.c.l.b16 %v1617
    %v2259 = vunpack.c.h.b16 %v1617
    %v2260 = vunpack.c.l.b16 %v1618
    %v2261 = vunpack.c.h.b16 %v1618
    %v2262 = vunpack.c.l.b16 %v1619
    %v2263 = vunpack.c.h.b16 %v1619
    %v2264 = vunpack.c.l.b16 %v1620
    %v2265 = vunpack.c.h.b16 %v1620
    %v2266 = vunpack.c.l.b16 %v1621
    %v2267 = vunpack.c.h.b16 %v1621
    %v2268 = vunpack.c.l.b16 %v1622
    %v2269 = vunpack.c.h.b16 %v1622
    %v2270 = vunpack.c.l.b16 %v1623
    %v2271 = vunpack.c.h.b16 %v1623
    %v2272 = vunpack.c.l.b16 %v1624
    %v2273 = vunpack.c.h.b16 %v1624
    %v2274 = vunpack.c.l.b16 %v1625
    %v2275 = vunpack.c.h.b16 %v1625
    %v2276 = vunpack.c.l.b16 %v1626
    %v2277 = vunpack.c.h.b16 %v1626
    %v2278 = vunpack.c.l.b16 %v1627
    %v2279 = vunpack.c.h.b16 %v1627
    %v2280 = vunpack.c.l.b16 %v1628
    %v2281 = vunpack.c.h.b16 %v1628
    %v2282 = vunpack.c.l.b16 %v1629
    %v2283 = vunpack.c.h.b16 %v1629
    %v2284 = vunpack.c.l.b16 %v1630
    %v2285 = vunpack.c.h.b16 %v1630
    %v2286 = vunpack.c.l.b16 %v1631
    %v2287 = vunpack.c.h.b16 %v1631
    %v2288 = vunpack.c.l.b16 %v1632
    %v2289 = vunpack.c.h.b16 %v1632
    %v2290 = vunpack.c.l.b16 %v1633
    %v2291 = vunpack.c.h.b16 %v1633
    %v2292 = vunpack.c.l.b16 %v1634
    %v2293 = vunpack.c.h.b16 %v1634
    %v2294 = vunpack.c.l.b16 %v1635
    %v2295 = vunpack.c.h.b16 %v1635
    %v2296 = vunpack.c.l.b16 %v1636
    %v2297 = vunpack.c.h.b16 %v1636
    %v2298 = vunpack.c.l.b16 %v1637
    %v2299 = vunpack.c.h.b16 %v1637
    %v2300 = vunpack.c.l.b16 %v1638
    %v2301 = vunpack.c.h.b16 %v1638
    %v2302 = vunpack.c.l.b16 %v1639
    %v2303 = vunpack.c.h.b16 %v1639
    %v2304 = vunpack.c.l.b16 %v1640
    %v2305 = vunpack.c.h.b16 %v1640
    %v2306 = vunpack.c.l.b16 %v1641
    %v2307 = vunpack.c.h.b16 %v1641
    %v2308 = vunpack.c.l.b16 %v1642
    %v2309 = vunpack.c.h.b16 %v1642
    %v2310 = vunpack.c.l.b16 %v1643
    %v2311 = vunpack.c.h.b16 %v1643
    %v2312 = vunpack.c.l.b16 %v1644
    %v2313 = vunpack.c.h.b16 %v1644
    %v2314 = vunpack.c.l.b16 %v1645
    %v2315 = vunpack.c.h.b16 %v1645
    %v2316 = vunpack.c.l.b16 %v1646
    %v2317 = vunpack.c.h.b16 %v1646
    %v2318 = vunpack.c.l.b16 %v1647
    %v2319 = vunpack.c.h.b16 %v1647
    %v2320 = vunpack.c.l.b16 %v1648
    %v2321 = vunpack.c.h.b16 %v1648
    %v2322 = vunpack.c.l.b16 %v1649
    %v2323 = vunpack.c.h.b16 %v1649
    %v2324 = vunpack.c.l.b16 %v1650
    %v2325 = vunpack.c.h.b16 %v1650
    %v2326 = vunpack.c.l.b16 %v1651
    %v2327 = vunpack.c.h.b16 %v1651
    %v2328 = vunpack.c.l.b16 %v1652
    %v2329 = vunpack.c.h.b16 %v1652
    %v2330 = vunpack.c.l.b16 %v1653
    %v2331 = vunpack.c.h.b16 %v1653
    %v2332 = vunpack.c.l.b16 %v1654
    %v2333 = vunpack.c.h.b16 %v1654
    %v2334 = vunpack.c.l.b16 %v1655
    %v2335 = vunpack.c.h.b16 %v1655
    %v2336 = vunpack.c.l.b16 %v1656
    %v2337 = vunpack.c.h.b16 %v1656
    %v2338 = vunpack.c.l.b16 %v1657
    %v2339 = vunpack.c.h.b16 %v1657
    %v2340 = vunpack.c.l.b16 %v1658
    %v2341 = vunpack.c.h.b16 %v1658
    %v2342 = vunpack.c.l.b16 %v1659
    %v2343 = vunpack.c.h.b16 %v1659
    %v2344 = vunpack.c.l.b16 %v1660
    %v2345 = vunpack.c.h.b16 %v1660
    %v2346 = vunpack.c.l.b16 %v1661
    %v2347 = vunpack.c.h.b16 %v1661
    %v2348 = vunpack.c.l.b16 %v1662
    %v2349 = vunpack.c.h.b16 %v1662
    %v2350 = vunpack.c.l.b16 %v1663
    %v2351 = vunpack.c.h.b16 %v1663
    %v2352 = vunpack.c.l.b16 %v1664
    %v2353 = vunpack.c.h.b16 %v1664
    %v2354 = vunpack.c.l.b16 %v1665
    %v2355 = vunpack.c.h.b16 %v1665
    %v2356 = vunpack.c.l.b16 %v1666
    %v2357 = vunpack.c.h.b16 %v1666
    %v2358 = vunpack.c.l.b16 %v1667
    %v2359 = vunpack.c.h.b16 %v1667
    %v2360 = vunpack.c.l.b16 %v1668
    %v2361 = vunpack.c.h.b16 %v1668
    %v2362 = vunpack.c.l.b16 %v1669
    %v2363 = vunpack.c.h.b16 %v1669
    %v2364 = vunpack.c.l.b16 %v1670
    %v2365 = vunpack.c.h.b16 %v1670
    %v2366 = vunpack.c.l.b16 %v1671
    %v2367 = vunpack.c.h.b16 %v1671
    %v2368 = vunpack.c.l.b16 %v1672
    %v2369 = vunpack.c.h.b16 %v1672
    %v2370 = vunpack.c.l.b16 %v1673
    %v2371 = vunpack.c.h.b16 %v1673
    %v2372 = vunpack.c.l.b16 %v1674
    %v2373 = vunpack.c.h.b16 %v1674
    %v2374 = vunpack.c.l.b16 %v1675
    %v2375 = vunpack.c.h.b16 %v1675
    %v2376 = vunpack.c.l.b16 %v1676
    %v2377 = vunpack.c.h.b16 %v1676
    %v2378 = vunpack.c.l.b16 %v1677
    %v2379 = vunpack.c.h.b16 %v1677
    %v2380 = vunpack.c.l.b16 %v1678
    %v2381 = vunpack.c.h.b16 %v1678
    %v2382 = vunpack.c.l.b16 %v1679
    %v2383 = vunpack.c.h.b16 %v1679
    %v2384 = vunpack.c.l.b16 %v1680
    %v2385 = vunpack.c.h.b16 %v1680
    %v2386 = vunpack.c.l.b16 %v1681
    %v2387 = vunpack.c.h.b16 %v1681
    %v2388 = vunpack.c.l.b16 %v1682
    %v2389 = vunpack.c.h.b16 %v1682
    %v2390 = vunpack.c.l.b16 %v1683
    %v2391 = vunpack.c.h.b16 %v1683
    %v2392 = vunpack.c.l.b16 %v1684
    %v2393 = vunpack.c.h.b16 %v1684
    %v2394 = vunpack.c.l.b16 %v1685
    %v2395 = vunpack.c.h.b16 %v1685
    %v2396 = vunpack.c.l.b16 %v1686
    %v2397 = vunpack.c.h.b16 %v1686
    %v2398 = vunpack.c.l.b16 %v1687
    %v2399 = vunpack.c.h.b16 %v1687
    %v2400 = vunpack.c.l.b16 %v1688
    %v2401 = vunpack.c.h.b16 %v1688
    %v2402 = vunpack.c.l.b16 %v1689
    %v2403 = vunpack.c.h.b16 %v1689
    %v2404 = vunpack.c.l.b16 %v1690
    %v2405 = vunpack.c.h.b16 %v1690
    %v2406 = vunpack.c.l.b16 %v1691
    %v2407 = vunpack.c.h.b16 %v1691
    %v2408 = vunpack.c.l.b16 %v1692
    %v2409 = vunpack.c.h.b16 %v1692
    %v2410 = vunpack.c.l.b16 %v1693
    %v2411 = vunpack.c.h.b16 %v1693
    %v2412 = vunpack.c.l.b16 %v1694
    %v2413 = vunpack.c.h.b16 %v1694
    %v2414 = vunpack.c.l.b16 %v1695
    %v2415 = vunpack.c.h.b16 %v1695
    %v2416 = vunpack.c.l.b16 %v1696
    %v2417 = vunpack.c.h.b16 %v1696
    %v2418 = vunpack.c.l.b16 %v1697
    %v2419 = vunpack.c.h.b16 %v1697
    %v2420 = vunpack.c.l.b16 %v1698
    %v2421 = vunpack.c.h.b16 %v1698
    %v2422 = vunpack.c.l.b16 %v1699
    %v2423 = vunpack.c.h.b16 %v1699
    %v2424 = vunpack.c.l.b16 %v1700
    %v2425 = vunpack.c.h.b16 %v1700
    %v2426 = vunpack.c.l.b16 %v1701
    %v2427 = vunpack.c.h.b16 %v1701
    %v2428 = vunpack.c.l.b16 %v1702
    %v2429 = vunpack.c.h.b16 %v1702
    %v2430 = vunpack.c.l.b16 %v1703
    %v2431 = vunpack.c.h.b16 %v1703
    %v2432 = vunpack.c.l.b16 %v1704
    %v2433 = vunpack.c.h.b16 %v1704
    %v2434 = vunpack.c.l.b16 %v1705
    %v2435 = vunpack.c.h.b16 %v1705
    %v2436 = vunpack.c.l.b16 %v1706
    %v2437 = vunpack.c.h.b16 %v1706
    %v2438 = vunpack.c.l.b16 %v1707
    %v2439 = vunpack.c.h.b16 %v1707
    %v2440 = vunpack.c.l.b16 %v1708
    %v2441 = vunpack.c.h.b16 %v1708
    %v2442 = vunpack.c.l.b16 %v1709
    %v2443 = vunpack.c.h.b16 %v1709
    %v2444 = vunpack.c.l.b16 %v1710
    %v2445 = vunpack.c.h.b16 %v1710
    %v2446 = vunpack.c.l.b16 %v1711
    %v2447 = vunpack.c.h.b16 %v1711
    %v2448 = vunpack.c.l.b16 %v1712
    %v2449 = vunpack.c.h.b16 %v1712
    %v2450 = vunpack.c.l.b16 %v1713
    %v2451 = vunpack.c.h.b16 %v1713
    %v2452 = vunpack.c.l.b16 %v1714
    %v2453 = vunpack.c.h.b16 %v1714
    %v2454 = vunpack.c.l.b16 %v1715
    %v2455 = vunpack.c.h.b16 %v1715
    %v2456 = vunpack.c.l.b16 %v1716
    %v2457 = vunpack.c.h.b16 %v1716
    %v2458 = vunpack.c.l.b16 %v1717
    %v2459 = vunpack.c.h.b16 %v1717
    %v2460 = vunpack.c.l.b16 %v1718
    %v2461 = vunpack.c.h.b16 %v1718
    %v2462 = vunpack.c.l.b16 %v1719
    %v2463 = vunpack.c.h.b16 %v1719
    %v2464 = vunpack.c.l.b16 %v1720
    %v2465 = vunpack.c.h.b16 %v1720
    %v2466 = vunpack.c.l.b16 %v1721
    %v2467 = vunpack.c.h.b16 %v1721
    %v2468 = vunpack.c.l.b16 %v1722
    %v2469 = vunpack.c.h.b16 %v1722
    %v2470 = vunpack.c.l.b16 %v1723
    %v2471 = vunpack.c.h.b16 %v1723
    %v2472 = vunpack.c.l.b16 %v1724
    %v2473 = vunpack.c.h.b16 %v1724
    %v2474 = vunpack.c.l.b16 %v1725
    %v2475 = vunpack.c.h.b16 %v1725
    %v2476 = vunpack.c.l.b16 %v1726
    %v2477 = vunpack.c.h.b16 %v1726
    %v2478 = vunpack.c.l.b16 %v1727
    %v2479 = vunpack.c.h.b16 %v1727
    %v2480 = vunpack.c.l.b16 %v1728
    %v2481 = vunpack.c.h.b16 %v1728
    %v2482 = vunpack.c.l.b16 %v1729
    %v2483 = vunpack.c.h.b16 %v1729
    %v2484 = vunpack.c.l.b16 %v1730
    %v2485 = vunpack.c.h.b16 %v1730
    %v2486 = vunpack.c.l.b16 %v1731
    %v2487 = vunpack.c.h.b16 %v1731
    %v2488 = vunpack.c.l.b16 %v1732
    %v2489 = vunpack.c.h.b16 %v1732
    %v2490 = vunpack.c.l.b16 %v1733
    %v2491 = vunpack.c.h.b16 %v1733
    %v2492 = vunpack.c.l.b16 %v1734
    %v2493 = vunpack.c.h.b16 %v1734
    %v2494 = vunpack.c.l.b16 %v1735
    %v2495 = vunpack.c.h.b16 %v1735
    %v2496 = vunpack.c.l.b16 %v1736
    %v2497 = vunpack.c.h.b16 %v1736
    %v2498 = vunpack.c.l.b16 %v1737
    %v2499 = vunpack.c.h.b16 %v1737
    %v2500 = vunpack.c.l.b16 %v1738
    %v2501 = vunpack.c.h.b16 %v1738
    %v2502 = vunpack.c.l.b16 %v1739
    %v2503 = vunpack.c.h.b16 %v1739
    %v2504 = vunpack.c.l.b16 %v1740
    %v2505 = vunpack.c.h.b16 %v1740
    %v2506 = vunpack.c.l.b16 %v1741
    %v2507 = vunpack.c.h.b16 %v1741
    %v2508 = vunpack.c.l.b16 %v1742
    %v2509 = vunpack.c.h.b16 %v1742
    %v2510 = vunpack.c.l.b16 %v1743
    %v2511 = vunpack.c.h.b16 %v1743
    %v2512 = vunpack.c.l.b16 %v1744
    %v2513 = vunpack.c.h.b16 %v1744
    %v2514 = vunpack.c.l.b16 %v1745
    %v2515 = vunpack.c.h.b16 %v1745
    %v2516 = vunpack.c.l.b16 %v1746
    %v2517 = vunpack.c.h.b16 %v1746
    %v2518 = vunpack.c.l.b16 %v1747
    %v2519 = vunpack.c.h.b16 %v1747
    %v2520 = vunpack.c.l.b16 %v1748
    %v2521 = vunpack.c.h.b16 %v1748
    %v2522 = vunpack.c.l.b16 %v1749
    %v2523 = vunpack.c.h.b16 %v1749
    %v2524 = vunpack.c.l.b16 %v1750
    %v2525 = vunpack.c.h.b16 %v1750
    %v2526 = vunpack.c.l.b16 %v1751
    %v2527 = vunpack.c.h.b16 %v1751
    %v2528 = vunpack.c.l.b16 %v1752
    %v2529 = vunpack.c.h.b16 %v1752
    %v2530 = vunpack.c.l.b16 %v1753
    %v2531 = vunpack.c.h.b16 %v1753
    %v2532 = vunpack.c.l.b16 %v1754
    %v2533 = vunpack.c.h.b16 %v1754
    %v2534 = vunpack.c.l.b16 %v1755
    %v2535 = vunpack.c.h.b16 %v1755
    %v2536 = vunpack.c.l.b16 %v1756
    %v2537 = vunpack.c.h.b16 %v1756
    %v2538 = vunpack.c.l.b16 %v1757
    %v2539 = vunpack.c.h.b16 %v1757
    %v2540 = vunpack.c.l.b16 %v1758
    %v2541 = vunpack.c.h.b16 %v1758
    %v2542 = vunpack.c.l.b16 %v1759
    %v2543 = vunpack.c.h.b16 %v1759
    %v2544 = vunpack.c.l.b16 %v1760
    %v2545 = vunpack.c.h.b16 %v1760
    %v2546 = vunpack.c.l.b16 %v1761
    %v2547 = vunpack.c.h.b16 %v1761
    %v2548 = vunpack.c.l.b16 %v1762
    %v2549 = vunpack.c.h.b16 %v1762
    %v2550 = vunpack.c.l.b16 %v1763
    %v2551 = vunpack.c.h.b16 %v1763
    %v2552 = vunpack.c.l.b16 %v1764
    %v2553 = vunpack.c.h.b16 %v1764
    %v2554 = vunpack.c.l.b16 %v1765
    %v2555 = vunpack.c.h.b16 %v1765
    %v2556 = vunpack.c.l.b16 %v1766
    %v2557 = vunpack.c.h.b16 %v1766
    %v2558 = vunpack.c.l.b16 %v1767
    %v2559 = vunpack.c.h.b16 %v1767
    %v2560 = vunpack.c.l.b16 %v1768
    %v2561 = vunpack.c.h.b16 %v1768
    %v2562 = vunpack.c.l.b16 %v1769
    %v2563 = vunpack.c.h.b16 %v1769
    %v2564 = vunpack.c.l.b16 %v1770
    %v2565 = vunpack.c.h.b16 %v1770
    %v2566 = vunpack.c.l.b16 %v1771
    %v2567 = vunpack.c.h.b16 %v1771
    %v2568 = vunpack.c.l.b16 %v1772
    %v2569 = vunpack.c.h.b16 %v1772
    %v2570 = vunpack.c.l.b16 %v1773
    %v2571 = vunpack.c.h.b16 %v1773
    %v2572 = vunpack.c.l.b16 %v1774
    %v2573 = vunpack.c.h.b16 %v1774
    %v2574 = vunpack.c.l.b16 %v1775
    %v2575 = vunpack.c.h.b16 %v1775
    %v2576 = vunpack.c.l.b16 %v1776
    %v2577 = vunpack.c.h.b16 %v1776
    %v2578 = vunpack.c.l.b16 %v1777
    %v2579 = vunpack.c.h.b16 %v1777
    %v2580 = vunpack.c.l.b16 %v1778
    %v2581 = vunpack.c.h.b16 %v1778
    %v2582 = vunpack.c.l.b16 %v1779
    %v2583 = vunpack.c.h.b16 %v1779
    %v2584 = vunpack.c.l.b16 %v1780
    %v2585 = vunpack.c.h.b16 %v1780
    %v2586 = vunpack.c.l.b16 %v1781
    %v2587 = vunpack.c.h.b16 %v1781
    %v2588 = vunpack.c.l.b16 %v1782
    %v2589 = vunpack.c.h.b16 %v1782
    %v2590 = vunpack.c.l.b16 %v1783
    %v2591 = vunpack.c.h.b16 %v1783
    %v2592 = vunpack.c.l.b16 %v1784
    %v2593 = vunpack.c.h.b16 %v1784
    %v2594 = vunpack.c.l.b16 %v1785
    %v2595 = vunpack.c.h.b16 %v1785
    %v2596 = vpack.c.b16 %v2092, %v2084
    %v2597 = vpack.c.b16 %v2093, %v2085
    %v2598 = vpack.c.b16 %v2094, %v2086
    %v2599 = vpack.c.b16 %v2095, %v2087
    %v2600 = vpack.c.b16 %v2096, %v2088
    %v2601 = vpack.c.b16 %v2097, %v2089
    %v2602 = vpack.c.b16 %v2098, %v2090
    %v2603 = vpack.c.b16 %v2099, %v2091
    %v2604 = vpack.c.b16 %v2108, %v2100
    %v2605 = vpack.c.b16 %v2109, %v2101
    %v2606 = vpack.c.b16 %v2110, %v2102
    %v2607 = vpack.c.b16 %v2111, %v2103
    %v2608 = vpack.c.b16 %v2112, %v2104
    %v2609 = vpack.c.b16 %v2113, %v2105
    %v2610 = vpack.c.b16 %v2114, %v2106
    %v2611 = vpack.c.b16 %v2115, %v2107
    %v2612 = vpack.c.b16 %v2124, %v2116
    %v2613 = vpack.c.b16 %v2125, %v2117
    %v2614 = vpack.c.b16 %v2126, %v2118
    %v2615 = vpack.c.b16 %v2127, %v2119
    %v2616 = vpack.c.b16 %v2128, %v2120
    %v2617 = vpack.c.b16 %v2129, %v2121
    %v2618 = vpack.c.b16 %v2130, %v2122
    %v2619 = vpack.c.b16 %v2131, %v2123
    %v2620 = vpack.c.b16 %v2140, %v2132
    %v2621 = vpack.c.b16 %v2141, %v2133
    %v2622 = vpack.c.b16 %v2142, %v2134
    %v2623 = vpack.c.b16 %v2143, %v2135
    %v2624 = vpack.c.b16 %v2144, %v2136
    %v2625 = vpack.c.b16 %v2145, %v2137
    %v2626 = vpack.c.b16 %v2146, %v2138
    %v2627 = vpack.c.b16 %v2147, %v2139
    %v2628 = vpack.c.b16 %v2156, %v2148
    %v2629 = vpack.c.b16 %v2157, %v2149
    %v2630 = vpack.c.b16 %v2158, %v2150
    %v2631 = vpack.c.b16 %v2159, %v2151
    %v2632 = vpack.c.b16 %v2160, %v2152
    %v2633 = vpack.c.b16 %v2161, %v2153
    %v2634 = vpack.c.b16 %v2162, %v2154
    %v2635 = vpack.c.b16 %v2163, %v2155
    %v2636 = vpack.c.b16 %v2172, %v2164
    %v2637 = vpack.c.b16 %v2173, %v2165
    %v2638 = vpack.c.b16 %v2174, %v2166
    %v2639 = vpack.c.b16 %v2175, %v2167
    %v2640 = vpack.c.b16 %v2176, %v2168
    %v2641 = vpack.c.b16 %v2177, %v2169
    %v2642 = vpack.c.b16 %v2178, %v2170
    %v2643 = vpack.c.b16 %v2179, %v2171
    %v2644 = vpack.c.b16 %v2188, %v2180
    %v2645 = vpack.c.b16 %v2189, %v2181
    %v2646 = vpack.c.b16 %v2190, %v2182
    %v2647 = vpack.c.b16 %v2191, %v2183
    %v2648 = vpack.c.b16 %v2192, %v2184
    %v2649 = vpack.c.b16 %v2193, %v2185
    %v2650 = vpack.c.b16 %v2194, %v2186
    %v2651 = vpack.c.b16 %v2195, %v2187
    %v2652 = vpack.c.b16 %v2204, %v2196
    %v2653 = vpack.c.b16 %v2205, %v2197
    %v2654 = vpack.c.b16 %v2206, %v2198
    %v2655 = vpack.c.b16 %v2207, %v2199
    %v2656 = vpack.c.b16 %v2208, %v2200
    %v2657 = vpack.c.b16 %v2209, %v2201
    %v2658 = vpack.c.b16 %v2210, %v2202
    %v2659 = vpack.c.b16 %v2211, %v2203
    %v2660 = vpack.c.b16 %v2220, %v2212
    %v2661 = vpack.c.b16 %v2221, %v2213
    %v2662 = vpack.c.b16 %v2222, %v2214
    %v2663 = vpack.c.b16 %v2223, %v2215
    %v2664 = vpack.c.b16 %v2224, %v2216
    %v2665 = vpack.c.b16 %v2225, %v2217
    %v2666 = vpack.c.b16 %v2226, %v2218
    %v2667 = vpack.c.b16 %v2227, %v2219
    %v2668 = vpack.c.b16 %v2236, %v2228
    %v2669 = vpack.c.b16 %v2237, %v2229
    %v2670 = vpack.c.b16 %v2238, %v2230
    %v2671 = vpack.c.b16 %v2239, %v2231
    %v2672 = vpack.c.b16 %v2240, %v2232
    %v2673 = vpack.c.b16 %v2241, %v2233
    %v2674 = vpack.c.b16 %v2242, %v2234
    %v2675 = vpack.c.b16 %v2243, %v2235
    %v2676 = vpack.c.b16 %v2252, %v2244
    %v2677 = vpack.c.b16 %v2253, %v2245
    %v2678 = vpack.c.b16 %v2254, %v2246
    %v2679 = vpack.c.b16 %v2255, %v2247
    %v2680 = vpack.c.b16 %v2256, %v2248
    %v2681 = vpack.c.b16 %v2257, %v2249
    %v2682 = vpack.c.b16 %v2258, %v2250
    %v2683 = vpack.c.b16 %v2259, %v2251
    %v2684 = vpack.c.b16 %v2268, %v2260
    %v2685 = vpack.c.b16 %v2269, %v2261
    %v2686 = vpack.c.b16 %v2270, %v2262
    %v2687 = vpack.c.b16 %v2271, %v2263
    %v2688 = vpack.c.b16 %v2272, %v2264
    %v2689 = vpack.c.b16 %v2273, %v2265
    %v2690 = vpack.c.b16 %v2274, %v2266
    %v2691 = vpack.c.b16 %v2275, %v2267
    %v2692 = vpack.c.b16 %v2284, %v2276
    %v2693 = vpack.c.b16 %v2285, %v2277
    %v2694 = vpack.c.b16 %v2286, %v2278
    %v2695 = vpack.c.b16 %v2287, %v2279
    %v2696 = vpack.c.b16 %v2288, %v2280
    %v2697 = vpack.c.b16 %v2289, %v2281
    %v2698 = vpack.c.b16 %v2290, %v2282
    %v2699 = vpack.c.b16 %v2291, %v2283
    %v2700 = vpack.c.b16 %v2300, %v2292
    %v2701 = vpack.c.b16 %v2301, %v2293
    %v2702 = vpack.c.b16 %v2302, %v2294
    %v2703 = vpack.c.b16 %v2303, %v2295
    %v2704 = vpack.c.b16 %v2304, %v2296
    %v2705 = vpack.c.b16 %v2305, %v2297
    %v2706 = vpack.c.b16 %v2306, %v2298
    %v2707 = vpack.c.b16 %v2307, %v2299
    %v2708 = vpack.c.b16 %v2316, %v2308
    %v2709 = vpack.c.b16 %v2317, %v2309
    %v2710 = vpack.c.b16 %v2318, %v2310
    %v2711 = vpack.c.b16 %v2319, %v2311
    %v2712 = vpack.c.b16 %v2320, %v2312
    %v2713 = vpack.c.b16 %v2321, %v2313
    %v2714 = vpack.c.b16 %v2322, %v2314
    %v2715 = vpack.c.b16 %v2323, %v2315
    %v2716 = vpack.c.b16 %v2332, %v2324
    %v2717 = vpack.c.b16 %v2333, %v2325
    %v2718 = vpack.c.b16 %v2334, %v2326
    %v2719 = vpack.c.b16 %v2335, %v2327
    %v2720 = vpack.c.b16 %v2336, %v2328
    %v2721 = vpack.c.b16 %v2337, %v2329
    %v2722 = vpack.c.b16 %v2338, %v2330
    %v2723 = vpack.c.b16 %v2339, %v2331
    %v2724 = vpack.c.b16 %v2348, %v2340
    %v2725 = vpack.c.b16 %v2349, %v2341
    %v2726 = vpack.c.b16 %v2350, %v2342
    %v2727 = vpack.c.b16 %v2351, %v2343
    %v2728 = vpack.c.b16 %v2352, %v2344
    %v2729 = vpack.c.b16 %v2353, %v2345
    %v2730 = vpack.c.b16 %v2354, %v2346
    %v2731 = vpack.c.b16 %v2355, %v2347
    %v2732 = vpack.c.b16 %v2364, %v2356
    %v2733 = vpack.c.b16 %v2365, %v2357
    %v2734 = vpack.c.b16 %v2366, %v2358
    %v2735 = vpack.c.b16 %v2367, %v2359
    %v2736 = vpack.c.b16 %v2368, %v2360
    %v2737 = vpack.c.b16 %v2369, %v2361
    %v2738 = vpack.c.b16 %v2370, %v2362
    %v2739 = vpack.c.b16 %v2371, %v2363
    %v2740 = vpack.c.b16 %v2380, %v2372
    %v2741 = vpack.c.b16 %v2381, %v2373
    %v2742 = vpack.c.b16 %v2382, %v2374
    %v2743 = vpack.c.b16 %v2383, %v2375
    %v2744 = vpack.c.b16 %v2384, %v2376
    %v2745 = vpack.c.b16 %v2385, %v2377
    %v2746 = vpack.c.b16 %v2386, %v2378
    %v2747 = vpack.c.b16 %v2387, %v2379
    %v2748 = vpack.c.b16 %v2396, %v2388
    %v2749 = vpack.c.b16 %v2397, %v2389
    %v2750 = vpack.c.b16 %v2398, %v2390
    %v2751 = vpack.c.b16 %v2399, %v2391
    %v2752 = vpack.c.b16 %v2400, %v2392
    %v2753 = vpack.c.b16 %v2401, %v2393
    %v2754 = vpack.c.b16 %v2402, %v2394
    %v2755 = vpack.c.b16 %v2403, %v2395
    %v2756 = vpack.c.b16 %v2412, %v2404
    %v2757 = vpack.c.b16 %v2413, %v2405
    %v2758 = vpack.c.b16 %v2414, %v2406
    %v2759 = vpack.c.b16 %v2415, %v2407
    %v2760 = vpack.c.b16 %v2416, %v2408
    %v2761 = vpack.c.b16 %v2417, %v2409
    %v2762 = vpack.c.b16 %v2418, %v2410
    %v2763 = vpack.c.b16 %v2419, %v2411
    %v2764 = vpack.c.b16 %v2428, %v2420
    %v2765 = vpack.c.b16 %v2429, %v2421
    %v2766 = vpack.c.b16 %v2430, %v2422
    %v2767 = vpack.c.b16 %v2431, %v2423
    %v2768 = vpack.c.b16 %v2432, %v2424
    %v2769 = vpack.c.b16 %v2433, %v2425
    %v2770 = vpack.c.b16 %v2434, %v2426
    %v2771 = vpack.c.b16 %v2435, %v2427
    %v2772 = vpack.c.b16 %v2444, %v2436
    %v2773 = vpack.c.b16 %v2445, %v2437
    %v2774 = vpack.c.b16 %v2446, %v2438
    %v2775 = vpack.c.b16 %v2447, %v2439
    %v2776 = vpack.c.b16 %v2448, %v2440
    %v2777 = vpack.c.b16 %v2449, %v2441
    %v2778 = vpack.c.b16 %v2450, %v2442
    %v2779 = vpack.c.b16 %v2451, %v2443
    %v2780 = vpack.c.b16 %v2460, %v2452
    %v2781 = vpack.c.b16 %v2461, %v2453
    %v2782 = vpack.c.b16 %v2462, %v2454
    %v2783 = vpack.c.b16 %v2463, %v2455
    %v2784 = vpack.c.b16 %v2464, %v2456
    %v2785 = vpack.c.b16 %v2465, %v2457
    %v2786 = vpack.c.b16 %v2466, %v2458
    %v2787 = vpack.c.b16 %v2467, %v2459
    %v2788 = vpack.c.b16 %v2476, %v2468
    %v2789 = vpack.c.b16 %v2477, %v2469
    %v2790 = vpack.c.b16 %v2478, %v2470
    %v2791 = vpack.c.b16 %v2479, %v2471
    %v2792 = vpack.c.b16 %v2480, %v2472
    %v2793 = vpack.c.b16 %v2481, %v2473
    %v2794 = vpack.c.b16 %v2482, %v2474
    %v2795 = vpack.c.b16 %v2483, %v2475
    %v2796 = vpack.c.b16 %v2492, %v2484
    %v2797 = vpack.c.b16 %v2493, %v2485
    %v2798 = vpack.c.b16 %v2494, %v2486
    %v2799 = vpack.c.b16 %v2495, %v2487
    %v2800 = vpack.c.b16 %v2496, %v2488
    %v2801 = vpack.c.b16 %v2497, %v2489
    %v2802 = vpack.c.b16 %v2498, %v2490
    %v2803 = vpack.c.b16 %v2499, %v2491
    %v2804 = vpack.c.b16 %v2508, %v2500
    %v2805 = vpack.c.b16 %v2509, %v2501
    %v2806 = vpack.c.b16 %v2510, %v2502
    %v2807 = vpack.c.b16 %v2511, %v2503
    %v2808 = vpack.c.b16 %v2512, %v2504
    %v2809 = vpack.c.b16 %v2513, %v2505
    %v2810 = vpack.c.b16 %v2514, %v2506
    %v2811 = vpack.c.b16 %v2515, %v2507
    %v2812 = vpack.c.b16 %v2524, %v2516
    %v2813 = vpack.c.b16 %v2525, %v2517
    %v2814 = vpack.c.b16 %v2526, %v2518
    %v2815 = vpack.c.b16 %v2527, %v2519
    %v2816 = vpack.c.b16 %v2528, %v2520
    %v2817 = vpack.c.b16 %v2529, %v2521
    %v2818 = vpack.c.b16 %v2530, %v2522
    %v2819 = vpack.c.b16 %v2531, %v2523
    %v2820 = vpack.c.b16 %v2540, %v2532
    %v2821 = vpack.c.b16 %v2541, %v2533
    %v2822 = vpack.c.b16 %v2542, %v2534
    %v2823 = vpack.c.b16 %v2543, %v2535
    %v2824 = vpack.c.b16 %v2544, %v2536
    %v2825 = vpack.c.b16 %v2545, %v2537
    %v2826 = vpack.c.b16 %v2546, %v2538
    %v2827 = vpack.c.b16 %v2547, %v2539
    %v2828 = vpack.c.b16 %v2556, %v2548
    %v2829 = vpack.c.b16 %v2557, %v2549
    %v2830 = vpack.c.b16 %v2558, %v2550
    %v2831 = vpack.c.b16 %v2559, %v2551
    %v2832 = vpack.c.b16 %v2560, %v2552
    %v2833 = vpack.c.b16 %v2561, %v2553
    %v2834 = vpack.c.b16 %v2562, %v2554
    %v2835 = vpack.c.b16 %v2563, %v2555
    %v2836 = vpack.c.b16 %v2572, %v2564
    %v2837 = vpack.c.b16 %v2573, %v2565
    %v2838 = vpack.c.b16 %v2574, %v2566
    %v2839 = vpack.c.b16 %v2575, %v2567
    %v2840 = vpack.c.b16 %v2576, %v2568
    %v2841 = vpack.c.b16 %v2577, %v2569
    %v2842 = vpack.c.b16 %v2578, %v2570
    %v2843 = vpack.c.b16 %v2579, %v2571
    %v2844 = vpack.c.b16 %v2588, %v2580
    %v2845 = vpack.c.b16 %v2589, %v2581
    %v2846 = vpack.c.b16 %v2590, %v2582
    %v2847 = vpack.c.b16 %v2591, %v2583
    %v2848 = vpack.c.b16 %v2592, %v2584
    %v2849 = vpack.c.b16 %v2593, %v2585
    %v2850 = vpack.c.b16 %v2594, %v2586
    %v2851 = vpack.c.b16 %v2595, %v2587
    %3108 = vmatprep.subr.bf16.mxu0 %v2597
    %3109 = vmatpush1.bf16.msra.mxu0 %v2596
    %3110 = vmatprep.subr.bf16.mxu0 %v2605
    %3111 = vmatpush1.bf16.msra.mxu0 %v2604
    %3112 = vmatprep.subr.bf16.mxu0 %v2613
    %3113 = vmatpush1.bf16.msra.mxu0 %v2612
    %3114 = vmatprep.subr.bf16.mxu0 %v2621
    %3115 = vmatpush1.bf16.msra.mxu0 %v2620
    %3116 = vmatprep.subr.bf16.mxu0 %v2629
    %3117 = vmatpush1.bf16.msra.mxu0 %v2628
    %3118 = vmatprep.subr.bf16.mxu0 %v2637
    %3119 = vmatpush1.bf16.msra.mxu0 %v2636
    %3120 = vmatprep.subr.bf16.mxu0 %v2645
    %3121 = vmatpush1.bf16.msra.mxu0 %v2644
    %3122 = vmatprep.subr.bf16.mxu0 %v2653
    %3123 = vmatpush1.bf16.msra.mxu0 %v2652
    %3124 = vmatprep.subr.bf16.mxu0 %v2661
    %3125 = vmatpush1.bf16.msra.mxu0 %v2660
    %3126 = vmatprep.subr.bf16.mxu0 %v2669
    %3127 = vmatpush1.bf16.msra.mxu0 %v2668
    %3128 = vmatprep.subr.bf16.mxu0 %v2677
    %3129 = vmatpush1.bf16.msra.mxu0 %v2676
    %3130 = vmatprep.subr.bf16.mxu0 %v2685
    %3131 = vmatpush1.bf16.msra.mxu0 %v2684
    %3132 = vmatprep.subr.bf16.mxu0 %v2693
    %3133 = vmatpush1.bf16.msra.mxu0 %v2692
    %3134 = vmatprep.subr.bf16.mxu0 %v2701
    %3135 = vmatpush1.bf16.msra.mxu0 %v2700
    %3136 = vmatprep.subr.bf16.mxu0 %v2709
    %3137 = vmatpush1.bf16.msra.mxu0 %v2708
    %3138 = vmatprep.subr.bf16.mxu0 %v2717
    %3139 = vmatpush1.bf16.msra.mxu0 %v2716
    %3140 = vmatprep.mubr.bf16.mxu0 %v1527
    %3141 = vmatmul.mubr.bf16.gmra.mrb[0].mxu0 %v1526
    %v3142 = vpop.f32.mrb[0].mxu0
    %v3143 = vadd.f32 %v1791, %v3142
    %v3144 = vpop.f32.mrb[0].mxu0
    %v3145 = vadd.f32 %v1795, %v3144
    %v3146 = vpop.f32.mrb[0].mxu0
    %v3147 = vadd.f32 %v1791, %v3146
    %v3148 = vpop.f32.mrb[0].mxu0
    %v3149 = vadd.f32 %v1795, %v3148
    %3150 = vdwg.mxu0
    %3151 = vmatprep.subr.bf16.mxu0 %v2725
    %3152 = vmatpush1.bf16.msra.mxu0 %v2724
    %3153 = vmatprep.subr.bf16.mxu0 %v2733
    %3154 = vmatpush1.bf16.msra.mxu0 %v2732
    %3155 = vmatprep.subr.bf16.mxu0 %v2741
    %3156 = vmatpush1.bf16.msra.mxu0 %v2740
    %3157 = vmatprep.subr.bf16.mxu0 %v2749
    %3158 = vmatpush1.bf16.msra.mxu0 %v2748
    %3159 = vmatprep.subr.bf16.mxu0 %v2757
    %3160 = vmatpush1.bf16.msra.mxu0 %v2756
    %3161 = vmatprep.subr.bf16.mxu0 %v2765
    %3162 = vmatpush1.bf16.msra.mxu0 %v2764
    %3163 = vmatprep.subr.bf16.mxu0 %v2773
    %3164 = vmatpush1.bf16.msra.mxu0 %v2772
    %3165 = vmatprep.subr.bf16.mxu0 %v2781
    %3166 = vmatpush1.bf16.msra.mxu0 %v2780
    %3167 = vmatprep.subr.bf16.mxu0 %v2789
    %3168 = vmatpush1.bf16.msra.mxu0 %v2788
    %3169 = vmatprep.subr.bf16.mxu0 %v2797
    %3170 = vmatpush1.bf16.msra.mxu0 %v2796
    %3171 = vmatprep.subr.bf16.mxu0 %v2805
    %3172 = vmatpush1.bf16.msra.mxu0 %v2804
    %3173 = vmatprep.subr.bf16.mxu0 %v2813
    %3174 = vmatpush1.bf16.msra.mxu0 %v2812
    %3175 = vmatprep.subr.bf16.mxu0 %v2821
    %3176 = vmatpush1.bf16.msra.mxu0 %v2820
    %3177 = vmatprep.subr.bf16.mxu0 %v2829
    %3178 = vmatpush1.bf16.msra.mxu0 %v2828
    %3179 = vmatprep.subr.bf16.mxu0 %v2837
    %3180 = vmatpush1.bf16.msra.mxu0 %v2836
    %3181 = vmatprep.subr.bf16.mxu0 %v2845
    %3182 = vmatpush1.bf16.msra.mxu0 %v2844
    %3183 = vmatprep.mubr.bf16.mxu0 %v1529
    %3184 = vmatmul.mubr.bf16.gmra.mrb[0].mxu0 %v1528
    %v3185 = vpop.f32.mrb[0].mxu0
    %v3186 = vadd.f32 %v3143, %v3185
    %v3187 = vpop.f32.mrb[0].mxu0
    %v3188 = vadd.f32 %v3145, %v3187
    %v3189 = vpop.f32.mrb[0].mxu0
    %v3190 = vadd.f32 %v3147, %v3189
    %v3191 = vpop.f32.mrb[0].mxu0
    %v3192 = vadd.f32 %v3149, %v3191
    %3193 = vdwg.mxu0
    %3194 = vmatprep.subr.bf16.mxu0 %v2599
    %3195 = vmatpush1.bf16.msra.mxu0 %v2598
    %3196 = vmatprep.subr.bf16.mxu0 %v2607
    %3197 = vmatpush1.bf16.msra.mxu0 %v2606
    %3198 = vmatprep.subr.bf16.mxu0 %v2615
    %3199 = vmatpush1.bf16.msra.mxu0 %v2614
    %3200 = vmatprep.subr.bf16.mxu0 %v2623
    %3201 = vmatpush1.bf16.msra.mxu0 %v2622
    %3202 = vmatprep.subr.bf16.mxu0 %v2631
    %3203 = vmatpush1.bf16.msra.mxu0 %v2630
    %3204 = vmatprep.subr.bf16.mxu0 %v2639
    %3205 = vmatpush1.bf16.msra.mxu0 %v2638
    %3206 = vmatprep.subr.bf16.mxu0 %v2647
    %3207 = vmatpush1.bf16.msra.mxu0 %v2646
    %3208 = vmatprep.subr.bf16.mxu0 %v2655
    %3209 = vmatpush1.bf16.msra.mxu0 %v2654
    %3210 = vmatprep.subr.bf16.mxu0 %v2663
    %3211 = vmatpush1.bf16.msra.mxu0 %v2662
    %3212 = vmatprep.subr.bf16.mxu0 %v2671
    %3213 = vmatpush1.bf16.msra.mxu0 %v2670
    %3214 = vmatprep.subr.bf16.mxu0 %v2679
    %3215 = vmatpush1.bf16.msra.mxu0 %v2678
    %3216 = vmatprep.subr.bf16.mxu0 %v2687
    %3217 = vmatpush1.bf16.msra.mxu0 %v2686
    %3218 = vmatprep.subr.bf16.mxu0 %v2695
    %3219 = vmatpush1.bf16.msra.mxu0 %v2694
    %3220 = vmatprep.subr.bf16.mxu0 %v2703
    %3221 = vmatpush1.bf16.msra.mxu0 %v2702
    %3222 = vmatprep.subr.bf16.mxu0 %v2711
    %3223 = vmatpush1.bf16.msra.mxu0 %v2710
    %3224 = vmatprep.subr.bf16.mxu0 %v2719
    %3225 = vmatpush1.bf16.msra.mxu0 %v2718
    %3226 = vmatprep.mubr.bf16.mxu0 %v1527
    %3227 = vmatmul.mubr.bf16.gmra.mrb[0].mxu0 %v1526
    %v3228 = vpop.f32.mrb[0].mxu0
    %v3229 = vadd.f32 %v1799, %v3228
    %v3230 = vpop.f32.mrb[0].mxu0
    %v3231 = vadd.f32 %v1803, %v3230
    %v3232 = vpop.f32.mrb[0].mxu0
    %v3233 = vadd.f32 %v1799, %v3232
    %v3234 = vpop.f32.mrb[0].mxu0
    %v3235 = vadd.f32 %v1803, %v3234
    %3236 = vdwg.mxu0
    %3237 = vmatprep.subr.bf16.mxu0 %v2727
    %3238 = vmatpush1.bf16.msra.mxu0 %v2726
    %3239 = vmatprep.subr.bf16.mxu0 %v2735
    %3240 = vmatpush1.bf16.msra.mxu0 %v2734
    %3241 = vmatprep.subr.bf16.mxu0 %v2743
    %3242 = vmatpush1.bf16.msra.mxu0 %v2742
    %3243 = vmatprep.subr.bf16.mxu0 %v2751
    %3244 = vmatpush1.bf16.msra.mxu0 %v2750
    %3245 = vmatprep.subr.bf16.mxu0 %v2759
    %3246 = vmatpush1.bf16.msra.mxu0 %v2758
    %3247 = vmatprep.subr.bf16.mxu0 %v2767
    %3248 = vmatpush1.bf16.msra.mxu0 %v2766
    %3249 = vmatprep.subr.bf16.mxu0 %v2775
    %3250 = vmatpush1.bf16.msra.mxu0 %v2774
    %3251 = vmatprep.subr.bf16.mxu0 %v2783
    %3252 = vmatpush1.bf16.msra.mxu0 %v2782
    %3253 = vmatprep.subr.bf16.mxu0 %v2791
    %3254 = vmatpush1.bf16.msra.mxu0 %v2790
    %3255 = vmatprep.subr.bf16.mxu0 %v2799
    %3256 = vmatpush1.bf16.msra.mxu0 %v2798
    %3257 = vmatprep.subr.bf16.mxu0 %v2807
    %3258 = vmatpush1.bf16.msra.mxu0 %v2806
    %3259 = vmatprep.subr.bf16.mxu0 %v2815
    %3260 = vmatpush1.bf16.msra.mxu0 %v2814
    %3261 = vmatprep.subr.bf16.mxu0 %v2823
    %3262 = vmatpush1.bf16.msra.mxu0 %v2822
    %3263 = vmatprep.subr.bf16.mxu0 %v2831
    %3264 = vmatpush1.bf16.msra.mxu0 %v2830
    %3265 = vmatprep.subr.bf16.mxu0 %v2839
    %3266 = vmatpush1.bf16.msra.mxu0 %v2838
    %3267 = vmatprep.subr.bf16.mxu0 %v2847
    %3268 = vmatpush1.bf16.msra.mxu0 %v2846
    %3269 = vmatprep.mubr.bf16.mxu0 %v1529
    %3270 = vmatmul.mubr.bf16.gmra.mrb[0].mxu0 %v1528
    %v3271 = vpop.f32.mrb[0].mxu0
    %v3272 = vadd.f32 %v3229, %v3271
    %v3273 = vpop.f32.mrb[0].mxu0
    %v3274 = vadd.f32 %v3231, %v3273
    %v3275 = vpop.f32.mrb[0].mxu0
    %v3276 = vadd.f32 %v3233, %v3275
    %v3277 = vpop.f32.mrb[0].mxu0
    %v3278 = vadd.f32 %v3235, %v3277
    %3279 = vdwg.mxu0
    %3280 = vmatprep.subr.bf16.mxu0 %v2601
    %3281 = vmatpush1.bf16.msra.mxu0 %v2600
    %3282 = vmatprep.subr.bf16.mxu0 %v2609
    %3283 = vmatpush1.bf16.msra.mxu0 %v2608
    %3284 = vmatprep.subr.bf16.mxu0 %v2617
    %3285 = vmatpush1.bf16.msra.mxu0 %v2616
    %3286 = vmatprep.subr.bf16.mxu0 %v2625
    %3287 = vmatpush1.bf16.msra.mxu0 %v2624
    %3288 = vmatprep.subr.bf16.mxu0 %v2633
    %3289 = vmatpush1.bf16.msra.mxu0 %v2632
    %3290 = vmatprep.subr.bf16.mxu0 %v2641
    %3291 = vmatpush1.bf16.msra.mxu0 %v2640
    %3292 = vmatprep.subr.bf16.mxu0 %v2649
    %3293 = vmatpush1.bf16.msra.mxu0 %v2648
    %3294 = vmatprep.subr.bf16.mxu0 %v2657
    %3295 = vmatpush1.bf16.msra.mxu0 %v2656
    %3296 = vmatprep.subr.bf16.mxu0 %v2665
    %3297 = vmatpush1.bf16.msra.mxu0 %v2664
    %3298 = vmatprep.subr.bf16.mxu0 %v2673
    %3299 = vmatpush1.bf16.msra.mxu0 %v2672
    %3300 = vmatprep.subr.bf16.mxu0 %v2681
    %3301 = vmatpush1.bf16.msra.mxu0 %v2680
    %3302 = vmatprep.subr.bf16.mxu0 %v2689
    %3303 = vmatpush1.bf16.msra.mxu0 %v2688
    %3304 = vmatprep.subr.bf16.mxu0 %v2697
    %3305 = vmatpush1.bf16.msra.mxu0 %v2696
    %3306 = vmatprep.subr.bf16.mxu0 %v2705
    %3307 = vmatpush1.bf16.msra.mxu0 %v2704
    %3308 = vmatprep.subr.bf16.mxu0 %v2713
    %3309 = vmatpush1.bf16.msra.mxu0 %v2712
    %3310 = vmatprep.subr.bf16.mxu0 %v2721
    %3311 = vmatpush1.bf16.msra.mxu0 %v2720
    %3312 = vmatprep.mubr.bf16.mxu0 %v1527
    %3313 = vmatmul.mubr.bf16.gmra.mrb[0].mxu0 %v1526
    %v3314 = vpop.f32.mrb[0].mxu0
    %v3315 = vadd.f32 %v1807, %v3314
    %v3316 = vpop.f32.mrb[0].mxu0
    %v3317 = vadd.f32 %v1811, %v3316
    %v3318 = vpop.f32.mrb[0].mxu0
    %v3319 = vadd.f32 %v1807, %v3318
    %v3320 = vpop.f32.mrb[0].mxu0
    %v3321 = vadd.f32 %v1811, %v3320
    %3322 = vdwg.mxu0
    %3323 = vmatprep.subr.bf16.mxu0 %v2729
    %3324 = vmatpush1.bf16.msra.mxu0 %v2728
    %3325 = vmatprep.subr.bf16.mxu0 %v2737
    %3326 = vmatpush1.bf16.msra.mxu0 %v2736
    %3327 = vmatprep.subr.bf16.mxu0 %v2745
    %3328 = vmatpush1.bf16.msra.mxu0 %v2744
    %3329 = vmatprep.subr.bf16.mxu0 %v2753
    %3330 = vmatpush1.bf16.msra.mxu0 %v2752
    %3331 = vmatprep.subr.bf16.mxu0 %v2761
    %3332 = vmatpush1.bf16.msra.mxu0 %v2760
    %3333 = vmatprep.subr.bf16.mxu0 %v2769
    %3334 = vmatpush1.bf16.msra.mxu0 %v2768
    %3335 = vmatprep.subr.bf16.mxu0 %v2777
    %3336 = vmatpush1.bf16.msra.mxu0 %v2776
    %3337 = vmatprep.subr.bf16.mxu0 %v2785
    %3338 = vmatpush1.bf16.msra.mxu0 %v2784
    %3339 = vmatprep.subr.bf16.mxu0 %v2793
    %3340 = vmatpush1.bf16.msra.mxu0 %v2792
    %3341 = vmatprep.subr.bf16.mxu0 %v2801
    %3342 = vmatpush1.bf16.msra.mxu0 %v2800
    %3343 = vmatprep.subr.bf16.mxu0 %v2809
    %3344 = vmatpush1.bf16.msra.mxu0 %v2808
    %3345 = vmatprep.subr.bf16.mxu0 %v2817
    %3346 = vmatpush1.bf16.msra.mxu0 %v2816
    %3347 = vmatprep.subr.bf16.mxu0 %v2825
    %3348 = vmatpush1.bf16.msra.mxu0 %v2824
    %3349 = vmatprep.subr.bf16.mxu0 %v2833
    %3350 = vmatpush1.bf16.msra.mxu0 %v2832
    %3351 = vmatprep.subr.bf16.mxu0 %v2841
    %3352 = vmatpush1.bf16.msra.mxu0 %v2840
    %3353 = vmatprep.subr.bf16.mxu0 %v2849
    %3354 = vmatpush1.bf16.msra.mxu0 %v2848
    %3355 = vmatprep.mubr.bf16.mxu0 %v1529
    %3356 = vmatmul.mubr.bf16.gmra.mrb[0].mxu0 %v1528
    %v3357 = vpop.f32.mrb[0].mxu0
    %v3358 = vadd.f32 %v3315, %v3357
    %v3359 = vpop.f32.mrb[0].mxu0
    %v3360 = vadd.f32 %v3317, %v3359
    %v3361 = vpop.f32.mrb[0].mxu0
    %v3362 = vadd.f32 %v3319, %v3361
    %v3363 = vpop.f32.mrb[0].mxu0
    %v3364 = vadd.f32 %v3321, %v3363
    %3365 = vdwg.mxu0
    %3366 = vmatprep.subr.bf16.mxu0 %v2603
    %3367 = vmatpush1.bf16.msra.mxu0 %v2602
    %3368 = vmatprep.subr.bf16.mxu0 %v2611
    %3369 = vmatpush1.bf16.msra.mxu0 %v2610
    %3370 = vmatprep.subr.bf16.mxu0 %v2619
    %3371 = vmatpush1.bf16.msra.mxu0 %v2618
    %3372 = vmatprep.subr.bf16.mxu0 %v2627
    %3373 = vmatpush1.bf16.msra.mxu0 %v2626
    %3374 = vmatprep.subr.bf16.mxu0 %v2635
    %3375 = vmatpush1.bf16.msra.mxu0 %v2634
    %3376 = vmatprep.subr.bf16.mxu0 %v2643
    %3377 = vmatpush1.bf16.msra.mxu0 %v2642
    %3378 = vmatprep.subr.bf16.mxu0 %v2651
    %3379 = vmatpush1.bf16.msra.mxu0 %v2650
    %3380 = vmatprep.subr.bf16.mxu0 %v2659
    %3381 = vmatpush1.bf16.msra.mxu0 %v2658
    %3382 = vmatprep.subr.bf16.mxu0 %v2667
    %3383 = vmatpush1.bf16.msra.mxu0 %v2666
    %3384 = vmatprep.subr.bf16.mxu0 %v2675
    %3385 = vmatpush1.bf16.msra.mxu0 %v2674
    %3386 = vmatprep.subr.bf16.mxu0 %v2683
    %3387 = vmatpush1.bf16.msra.mxu0 %v2682
    %3388 = vmatprep.subr.bf16.mxu0 %v2691
    %3389 = vmatpush1.bf16.msra.mxu0 %v2690
    %3390 = vmatprep.subr.bf16.mxu0 %v2699
    %3391 = vmatpush1.bf16.msra.mxu0 %v2698
    %3392 = vmatprep.subr.bf16.mxu0 %v2707
    %3393 = vmatpush1.bf16.msra.mxu0 %v2706
    %3394 = vmatprep.subr.bf16.mxu0 %v2715
    %3395 = vmatpush1.bf16.msra.mxu0 %v2714
    %3396 = vmatprep.subr.bf16.mxu0 %v2723
    %3397 = vmatpush1.bf16.msra.mxu0 %v2722
    %3398 = vmatprep.mubr.bf16.mxu0 %v1527
    %3399 = vmatmul.mubr.bf16.gmra.mrb[0].mxu0 %v1526
    %v3400 = vpop.f32.mrb[0].mxu0
    %v3401 = vadd.f32 %v1815, %v3400
    %v3402 = vpop.f32.mrb[0].mxu0
    %v3403 = vadd.f32 %v1819, %v3402
    %v3404 = vpop.f32.mrb[0].mxu0
    %v3405 = vadd.f32 %v1815, %v3404
    %v3406 = vpop.f32.mrb[0].mxu0
    %v3407 = vadd.f32 %v1819, %v3406
    %3408 = vdwg.mxu0
    %3409 = vmatprep.subr.bf16.mxu0 %v2731
    %3410 = vmatpush1.bf16.msra.mxu0 %v2730
    %3411 = vmatprep.subr.bf16.mxu0 %v2739
    %3412 = vmatpush1.bf16.msra.mxu0 %v2738
    %3413 = vmatprep.subr.bf16.mxu0 %v2747
    %3414 = vmatpush1.bf16.msra.mxu0 %v2746
    %3415 = vmatprep.subr.bf16.mxu0 %v2755
    %3416 = vmatpush1.bf16.msra.mxu0 %v2754
    %3417 = vmatprep.subr.bf16.mxu0 %v2763
    %3418 = vmatpush1.bf16.msra.mxu0 %v2762
    %3419 = vmatprep.subr.bf16.mxu0 %v2771
    %3420 = vmatpush1.bf16.msra.mxu0 %v2770
    %3421 = vmatprep.subr.bf16.mxu0 %v2779
    %3422 = vmatpush1.bf16.msra.mxu0 %v2778
    %3423 = vmatprep.subr.bf16.mxu0 %v2787
    %3424 = vmatpush1.bf16.msra.mxu0 %v2786
    %3425 = vmatprep.subr.bf16.mxu0 %v2795
    %3426 = vmatpush1.bf16.msra.mxu0 %v2794
    %3427 = vmatprep.subr.bf16.mxu0 %v2803
    %3428 = vmatpush1.bf16.msra.mxu0 %v2802
    %3429 = vmatprep.subr.bf16.mxu0 %v2811
    %3430 = vmatpush1.bf16.msra.mxu0 %v2810
    %3431 = vmatprep.subr.bf16.mxu0 %v2819
    %3432 = vmatpush1.bf16.msra.mxu0 %v2818
    %3433 = vmatprep.subr.bf16.mxu0 %v2827
    %3434 = vmatpush1.bf16.msra.mxu0 %v2826
    %3435 = vmatprep.subr.bf16.mxu0 %v2835
    %3436 = vmatpush1.bf16.msra.mxu0 %v2834
    %3437 = vmatprep.subr.bf16.mxu0 %v2843
    %3438 = vmatpush1.bf16.msra.mxu0 %v2842
    %3439 = vmatprep.subr.bf16.mxu0 %v2851
    %3440 = vmatpush1.bf16.msra.mxu0 %v2850
    %3441 = vmatprep.mubr.bf16.mxu0 %v1529
    %3442 = vmatmul.mubr.bf16.gmra.mrb[0].mxu0 %v1528
    %v3443 = vpop.f32.mrb[0].mxu0
    %v3444 = vadd.f32 %v3401, %v3443
    %v3445 = vpop.f32.mrb[0].mxu0
    %v3446 = vadd.f32 %v3403, %v3445
    %v3447 = vpop.f32.mrb[0].mxu0
    %v3448 = vadd.f32 %v3405, %v3447
    %v3449 = vpop.f32.mrb[0].mxu0
    %v3450 = vadd.f32 %v3407, %v3449
    %3451 = vdwg.mxu0
    %3452 = vst [vmem:[%s11] sm:$0xff] %v3186
    %3453 = vst [vmem:[%s11 + $0x8] sm:$0xff] %v3188
    %3454 = vst [vmem:[%s11 + $0x10] sm:$0xff] %v3272
    %3455 = vst [vmem:[%s11 + $0x18] sm:$0xff] %v3274
    %3456 = vst [vmem:[%s11 + $0x20] sm:$0xff] %v3358
    %3457 = vst [vmem:[%s11 + $0x28] sm:$0xff] %v3360
    %3458 = vst [vmem:[%s11 + $0x30] sm:$0xff] %v3444
    %3459 = vst [vmem:[%s11 + $0x38] sm:$0xff] %v3446
    %3460 = vst [vmem:[%s11 + $0x40] sm:$0xff] %v3190
    %3461 = vst [vmem:[%s11 + $0x48] sm:$0xff] %v3192
    %3462 = vst [vmem:[%s11 + $0x50] sm:$0xff] %v3276
    %3463 = vst [vmem:[%s11 + $0x58] sm:$0xff] %v3278
    %3464 = vst [vmem:[%s11 + $0x60] sm:$0xff] %v3362
    %3465 = vst [vmem:[%s11 + $0x68] sm:$0xff] %v3364
    %3466 = vst [vmem:[%s11 + $0x70] sm:$0xff] %v3448
    %3467 = vst [vmem:[%s11 + $0x78] sm:$0xff] %v3450
    // Predicated region
    $region62: #{mlp_g_forward.1} parent=1 // pred_check
      _
    $region63: #{mlp_g_forward.1} parent=1 // pred_check_branch
      %3469 = sbr.rel (0) target = $region65
    $region64: #{mlp_g_forward.1} parent=1 // pred_region
      _
    $region65: #{mlp_g_forward.1} parent=1 // pred_fallthru
      _
    // Predicated region
    $region66: #{mlp_g_forward.1} parent=1 // pred_check
      _
    $region67: #{mlp_g_forward.1} parent=1 // pred_check_branch
      %3471 = sbr.rel (0) target = $region69
    $region68: #{mlp_g_forward.1} parent=1 // pred_region
      _
    $region69: #{mlp_g_forward.1} parent=1 // pred_fallthru
      _
    %3472 = vsyncpa [#allocation3], 1
    %3473 = vsyncpa [#allocation5], 1
    %3474 = vsyncpa [#allocation8], 1

</llo_original>
